<compile_context>
chip_gen: v7x
topology: tpu7x:2x2x1
jax: 0.10.0
libtpu: 0.0.40
codegen_flags: <defaults>
</compile_context>

<pallas_src>
import math
from functools import partial

import jax
import jax.numpy as jnp
import numpy as np
from jax.experimental import pallas as pl
from jax.experimental.pallas import tpu as pltpu


# ---------------------------------------------------------------------------
# Fused ELA kernel (one grid step = one batch element)
# ---------------------------------------------------------------------------
def _ela_kernel(coef_ref, x_ref, sht_ref, swt_ref, pmat_ref, spw_ref, cw_ref,
                gamma_ref, beta_ref, o_ref, xh_pad, xw_pad,
                *, C, H, W, K, dil, pad, G, eps):
    f32 = jnp.float32
    Cg = C // G

    x = x_ref[0].astype(f32)                      # (C, HW)  lane-dense
    sht = sht_ref[...]                            # (H, HW)  1/W where i//W == h
    swt = swt_ref[...]                            # (W, HW)  1/H where i%W  == w
    pmat = pmat_ref[...]                          # (C, C)   same-group one-hot
    spw = spw_ref[...].astype(f32)                # (C, K)   depthwise conv taps
    gamma = gamma_ref[...].astype(f32)            # (C, 1)
    beta = beta_ref[...].astype(f32)              # (C, 1)

    # ---- spatial reductions on the MXU (contract the HW lane dim) ----------
    # 1/W and 1/H are pre-folded into sht / swt, so these are means directly.
    x_h = jnp.einsum('ci,hi->ch', x, sht, preferred_element_type=f32)   # (C, H)
    x_w = jnp.einsum('ci,wi->cw', x, swt, preferred_element_type=f32)   # (C, W)
    pooled = jnp.mean(x_h, axis=1, keepdims=True)                       # (C, 1)

    # ---- depthwise dilated conv1d + GroupNorm + sigmoid (tiny sequences) ----
    def conv_gn_sigmoid(seq, pad_ref, L):
        # zero only the pad borders in the VMEM scratch, copy seq to the middle
        if pad > 0:
            pad_ref[:, 0:pad] = jnp.zeros((C, pad), f32)
            pad_ref[:, pad + L:pad + L + pad] = jnp.zeros((C, pad), f32)
        pad_ref[:, pad:pad + L] = seq
        acc = jnp.zeros((C, L), f32)
        for j in range(K):                        # K is 3/5 -> unrolled taps
            acc = acc + spw[:, j:j + 1] * pad_ref[:, j * dil:j * dil + L]
        # vectorized GroupNorm (biased variance, like PyTorch; centered)
        inv_n = 1.0 / float(Cg * L)
        gsum = jnp.dot(pmat, acc, preferred_element_type=f32)           # (C, L)
        mean = jnp.sum(gsum, axis=1, keepdims=True) * inv_n             # (C, 1)
        d = acc - mean
        gsq = jnp.dot(pmat, d * d, preferred_element_type=f32)          # (C, L)
        var = jnp.sum(gsq, axis=1, keepdims=True) * inv_n               # (C, 1)
        inv = jax.lax.rsqrt(var + eps)
        return jax.nn.sigmoid(d * inv * gamma + beta)                   # (C, L)

    h_att = conv_gn_sigmoid(x_h, xh_pad, H)       # (C, H)
    w_att = conv_gn_sigmoid(x_w, xw_pad, W)       # (C, W)

    # ---- channel attention --------------------------------------------------
    # The ch branch is a depthwise Conv1d on a length-1 pooled sequence with
    # padding (K-1)//2: only the centre tap sees non-padding data, so it
    # reduces to a per-channel scale (valid while the pooled length is 1).
    cw = cw_ref[...].astype(f32)                  # (C, 1) centre taps
    ch_att = jax.nn.sigmoid(cw * pooled)          # (C, 1)

    ch_coef = coef_ref[0]
    sp_coef = coef_ref[1]
    res_coef = coef_ref[2]

    # ---- broadcast attention back to flat (C, HW) layout (MXU) and fuse -----
    # sp_coef folded into the small h_att so the big fuse is one mul-add pass.
    hb = jnp.dot(sp_coef * h_att, sht * W, preferred_element_type=f32)  # (C, HW)
    wb = jnp.dot(w_att, swt * H, preferred_element_type=f32)            # (C, HW)
    a = ch_coef * ch_att + res_coef                                     # (C, 1)
    o_ref[0] = (x * (hb * wb + a)).astype(o_ref.dtype)


# ---------------------------------------------------------------------------
# Wrapper
# ---------------------------------------------------------------------------
def ela_forward(x, params):
    B, C, H, W = x.shape
    k = int(params["kernel_size"])
    dil = 2
    pad = (k - 1) * 2 // 2
    G = max(1, C // 16)
    Cg = C // G
    HW = H * W
    f32 = jnp.float32

    xf = x.reshape(B, C, HW)                      # free, lane-dense view

    # small helper matrices (flatten<->unflatten one-hots with the mean scale
    # pre-folded, plus group membership for GroupNorm)
    hw = jnp.arange(HW)
    sht = (jnp.arange(H)[:, None] == hw[None, :] // W).astype(f32) * (1.0 / W)  # (H, HW)
    swt = (jnp.arange(W)[:, None] == hw[None, :] % W).astype(f32) * (1.0 / H)   # (W, HW)
    cidx = jnp.arange(C)
    pmat = (cidx[:, None] // Cg == cidx[None, :] // Cg).astype(f32)             # (C, C)

    coefs = jax.nn.sigmoid(jnp.stack([params["ch_weight"],
                                      params["sp_weight"],
                                      params["res_weight"]])).astype(f32)
    cw = params["ch_w"][:, k // 2].reshape(C, 1).astype(f32)
    gamma = params["gn_gamma"].reshape(C, 1).astype(f32)
    beta = params["gn_beta"].reshape(C, 1).astype(f32)
    spw = params["sp_w"].astype(f32)

    kern = partial(_ela_kernel, C=C, H=H, W=W, K=k, dil=dil, pad=pad, G=G,
                   eps=1e-5)
    const = lambda b: (0, 0)

    out = pl.pallas_call(
        kern,
        grid=(B,),
        in_specs=[
            pl.BlockSpec(memory_space=pltpu.MemorySpace.SMEM),         # coefs (3,)
            pl.BlockSpec((1, C, HW), lambda b: (b, 0, 0)),             # x flat
            pl.BlockSpec((H, HW), const),                              # sht
            pl.BlockSpec((W, HW), const),                              # swt
            pl.BlockSpec((C, C), const),                               # pmat
            pl.BlockSpec((C, k), const),                               # spatial conv w
            pl.BlockSpec((C, 1), const),                               # ch centre taps
            pl.BlockSpec((C, 1), const),                               # gn gamma
            pl.BlockSpec((C, 1), const),                               # gn beta
        ],
        out_specs=pl.BlockSpec((1, C, HW), lambda b: (b, 0, 0)),
        out_shape=jax.ShapeDtypeStruct((B, C, HW), x.dtype),
        scratch_shapes=[
            pltpu.VMEM((C, H + 2 * pad), jnp.float32),                 # padded x_h
            pltpu.VMEM((C, W + 2 * pad), jnp.float32),                 # padded x_w
        ],
        compiler_params=pltpu.CompilerParams(
            dimension_semantics=("parallel",),    # shard batch across TCs
            vmem_limit_bytes=32 * 1024 * 1024,
        ),
    )(coefs, xf, sht, swt, pmat, spw, cw, gamma, beta)

    return out.reshape(B, C, H, W)


# ---------------------------------------------------------------------------
# Pure-JAX reference (mirrors the PyTorch module)
# ---------------------------------------------------------------------------
def ela_reference(x, params):
    B, C, H, W = x.shape
    k = params["kernel_size"]
    G = max(1, C // 16)
    eps = 1e-5

    pooled = x.mean(axis=(2, 3))                                        # (B, C)
    ch_att = jax.nn.sigmoid(params["ch_w"][None, :, k // 2] * pooled)   # (B, C)

    def dwconv(seq, w, dil, pad):
        _, _, L = seq.shape
        xp = jnp.pad(seq, ((0, 0), (0, 0), (pad, pad)))
        out = jnp.zeros_like(seq)
        for j in range(w.shape[1]):
            out = out + w[None, :, j, None] * xp[:, :, j * dil: j * dil + L]
        return out

    def gn(y):
        Bc, Cc, L = y.shape
        yg = y.reshape(Bc, G, -1)
        m = yg.mean(-1, keepdims=True)
        v = yg.var(-1, keepdims=True)
        yn = ((yg - m) / jnp.sqrt(v + eps)).reshape(Bc, Cc, L)
        return yn * params["gn_gamma"][None, :, None] + params["gn_beta"][None, :, None]

    pad_sp = (k - 1) * 2 // 2
    h_att = jax.nn.sigmoid(gn(dwconv(x.mean(axis=3), params["sp_w"], 2, pad_sp)))
    w_att = jax.nn.sigmoid(gn(dwconv(x.mean(axis=2), params["sp_w"], 2, pad_sp)))
    ch_coef = jax.nn.sigmoid(params["ch_weight"])
    sp_coef = jax.nn.sigmoid(params["sp_weight"])
    res_coef = jax.nn.sigmoid(params["res_weight"])
    att = (ch_coef * ch_att[:, :, None, None]
           + sp_coef * (h_att[:, :, :, None] * w_att[:, :, None, :]))
    return x * att + res_coef * x


if __name__ == "__main__":
    B, C, H, W = 2, 32, 16, 16
    b_hp, gamma_hp = 1, 2
    k = int(abs((math.log(C, 2) + b_hp) / gamma_hp))
    k = k if k % 2 else k + 1                          # -> 3 for C=32

    key = jax.random.PRNGKey(0)
    kx, k1, k2 = jax.random.split(key, 3)
    x = jax.random.normal(kx, (B, C, H, W), jnp.float32)

    bound = 1.0 / math.sqrt(k)                         # kaiming-uniform, fan_in=k
    params = dict(
        kernel_size=k,
        ch_w=jax.random.uniform(k1, (C, k), jnp.float32, -bound, bound),
        sp_w=jax.random.uniform(k2, (C, k), jnp.float32, -bound, bound),
        gn_gamma=jnp.ones((C,), jnp.float32),          # GroupNorm default affine
        gn_beta=jnp.zeros((C,), jnp.float32),
        ch_weight=jnp.zeros((), jnp.float32),          # nn.Parameter(torch.zeros(1))
        sp_weight=jnp.zeros((), jnp.float32),
        res_weight=jnp.zeros((), jnp.float32),
    )

    out = jax.block_until_ready(ela_forward(x, params))
    ref = ela_reference(x, params)
    assert out.shape == x.shape and out.dtype == x.dtype
    np.testing.assert_allclose(np.asarray(out), np.asarray(ref), rtol=2e-3, atol=2e-3)
    print("KERNEL_OK")
</pallas_src>

<mosaic_0001>
module attributes {stable_mosaic.version = 11 : i64} {
  func.func @_ela_kernel(%arg0: i32, %arg1: memref<3xf32, #tpu.memory_space<smem>>, %arg2: memref<1x32x256xf32, #tpu.memory_space<vmem>>, %arg3: memref<16x256xf32, #tpu.memory_space<vmem>>, %arg4: memref<16x256xf32, #tpu.memory_space<vmem>>, %arg5: memref<32x32xf32, #tpu.memory_space<vmem>>, %arg6: memref<32x3xf32, #tpu.memory_space<vmem>>, %arg7: memref<32x1xf32, #tpu.memory_space<vmem>>, %arg8: memref<32x1xf32, #tpu.memory_space<vmem>>, %arg9: memref<32x1xf32, #tpu.memory_space<vmem>>, %arg10: memref<1x32x256xf32, #tpu.memory_space<vmem>>, %arg11: memref<32x20xf32, #tpu.memory_space<vmem>>, %arg12: memref<32x20xf32, #tpu.memory_space<vmem>>) attributes {dimension_semantics = [#tpu.dimension_semantics<parallel>], iteration_bounds = array<i64: 2>, scalar_prefetch = 0 : i64, scratch_operands = 2 : i64, tpu.core_type = #tpu.core_type<tc>, window_params = [{transform_indices = @transform_0, window_bounds = array<i64: 3>}, {transform_indices = @transform_1, window_bounds = array<i64: 1, 32, 256>}, {pipeline_mode = #tpu.pipeline_mode<synchronous>, transform_indices = @transform_2, window_bounds = array<i64: 16, 256>}, {pipeline_mode = #tpu.pipeline_mode<synchronous>, transform_indices = @transform_3, window_bounds = array<i64: 16, 256>}, {pipeline_mode = #tpu.pipeline_mode<synchronous>, transform_indices = @transform_4, window_bounds = array<i64: 32, 32>}, {pipeline_mode = #tpu.pipeline_mode<synchronous>, transform_indices = @transform_5, window_bounds = array<i64: 32, 3>}, {pipeline_mode = #tpu.pipeline_mode<synchronous>, transform_indices = @transform_6, window_bounds = array<i64: 32, 1>}, {pipeline_mode = #tpu.pipeline_mode<synchronous>, transform_indices = @transform_7, window_bounds = array<i64: 32, 1>}, {pipeline_mode = #tpu.pipeline_mode<synchronous>, transform_indices = @transform_8, window_bounds = array<i64: 32, 1>}, {transform_indices = @transform_9, window_bounds = array<i64: 1, 32, 256>}]} {
    %c0 = arith.constant 0 : index
    %c0_0 = arith.constant 0 : index
    %c0_1 = arith.constant 0 : index
    %0 = vector.load %arg2[%c0, %c0_0, %c0_1] : memref<1x32x256xf32, #tpu.memory_space<vmem>>, vector<1x32x256xf32>
    %1 = vector.shape_cast %0 : vector<1x32x256xf32> to vector<32x256xf32>
    %c0_2 = arith.constant 0 : index
    %c0_3 = arith.constant 0 : index
    %2 = vector.load %arg3[%c0_2, %c0_3] : memref<16x256xf32, #tpu.memory_space<vmem>>, vector<16x256xf32>
    %c0_4 = arith.constant 0 : index
    %c0_5 = arith.constant 0 : index
    %3 = vector.load %arg4[%c0_4, %c0_5] : memref<16x256xf32, #tpu.memory_space<vmem>>, vector<16x256xf32>
    %c0_6 = arith.constant 0 : index
    %c0_7 = arith.constant 0 : index
    %4 = vector.load %arg5[%c0_6, %c0_7] : memref<32x32xf32, #tpu.memory_space<vmem>>, vector<32x32xf32>
    %c0_8 = arith.constant 0 : index
    %c0_9 = arith.constant 0 : index
    %5 = vector.load %arg6[%c0_8, %c0_9] : memref<32x3xf32, #tpu.memory_space<vmem>>, vector<32x3xf32>
    %c0_10 = arith.constant 0 : index
    %c0_11 = arith.constant 0 : index
    %6 = vector.load %arg8[%c0_10, %c0_11] : memref<32x1xf32, #tpu.memory_space<vmem>>, vector<32x1xf32>
    %c0_12 = arith.constant 0 : index
    %c0_13 = arith.constant 0 : index
    %7 = vector.load %arg9[%c0_12, %c0_13] : memref<32x1xf32, #tpu.memory_space<vmem>>, vector<32x1xf32>
    "tpu.trace_start"() <{level = 10 : i32, message = "ci,hi->ch"}> : () -> ()
    %cst = arith.constant dense<0.000000e+00> : vector<32x16xf32>
    %8 = tpu.matmul %1, %2, %cst {dimension_numbers = #tpu.dot_dimension_numbers<[1], [1], [0], [0], [0, 0, 1, 0], [], []>} : vector<32x256xf32>, vector<16x256xf32>, vector<32x16xf32> -> vector<32x16xf32>
    "tpu.trace_stop"() : () -> ()
    "tpu.trace_start"() <{level = 10 : i32, message = "ci,wi->cw"}> : () -> ()
    %cst_14 = arith.constant dense<0.000000e+00> : vector<32x16xf32>
    %9 = tpu.matmul %1, %3, %cst_14 {dimension_numbers = #tpu.dot_dimension_numbers<[1], [1], [0], [0], [0, 0, 1, 0], [], []>} : vector<32x256xf32>, vector<16x256xf32>, vector<32x16xf32> -> vector<32x16xf32>
    "tpu.trace_stop"() : () -> ()
    %cst_15 = arith.constant dense<0.000000e+00> : vector<32xf32>
    %10 = vector.multi_reduction <add>, %8, %cst_15 [1] : vector<32x16xf32> to vector<32xf32>
    %11 = vector.shape_cast %10 : vector<32xf32> to vector<32x1xf32>
    %cst_16 = arith.constant 1.600000e+01 : f32
    %12 = vector.broadcast %cst_16 : f32 to vector<32x1xf32>
    %13 = arith.divf %11, %12 : vector<32x1xf32>
    %cst_17 = arith.constant 0.000000e+00 : f32
    %14 = vector.broadcast %cst_17 : f32 to vector<32x2xf32>
    %c0_18 = arith.constant 0 : index
    %c0_19 = arith.constant 0 : index
    %15 = vector.load %arg11[%c0_18, %c0_19] : memref<32x20xf32, #tpu.memory_space<vmem>>, vector<32x2xf32>
    tpu.vector_store %arg11[%c0_18, %c0_19], %14 {strides = array<i32>} : memref<32x20xf32, #tpu.memory_space<vmem>>, vector<32x2xf32>,
    %cst_20 = arith.constant 0.000000e+00 : f32
    %16 = vector.broadcast %cst_20 : f32 to vector<32x2xf32>
    %c0_21 = arith.constant 0 : index
    %c18 = arith.constant 18 : index
    %17 = vector.load %arg11[%c0_21, %c18] : memref<32x20xf32, #tpu.memory_space<vmem>>, vector<32x2xf32>
    tpu.vector_store %arg11[%c0_21, %c18], %16 {strides = array<i32>} : memref<32x20xf32, #tpu.memory_space<vmem>>, vector<32x2xf32>,
    %c0_22 = arith.constant 0 : index
    %c2 = arith.constant 2 : index
    %18 = vector.load %arg11[%c0_22, %c2] : memref<32x20xf32, #tpu.memory_space<vmem>>, vector<32x16xf32>
    tpu.vector_store %arg11[%c0_22, %c2], %8 {strides = array<i32>} : memref<32x20xf32, #tpu.memory_space<vmem>>, vector<32x16xf32>,
    %cst_23 = arith.constant 0.000000e+00 : f32
    %19 = vector.broadcast %cst_23 : f32 to vector<32x16xf32>
    %20 = vector.extract_strided_slice %5 {offsets = [0, 0], sizes = [32, 1], strides = [1, 1]} : vector<32x3xf32> to vector<32x1xf32>
    %c0_24 = arith.constant 0 : index
    %c0_25 = arith.constant 0 : index
    %21 = vector.load %arg11[%c0_24, %c0_25] : memref<32x20xf32, #tpu.memory_space<vmem>>, vector<32x16xf32>
    %22 = vector.broadcast %20 : vector<32x1xf32> to vector<32x16xf32>
    %23 = arith.mulf %22, %21 : vector<32x16xf32>
    %24 = arith.addf %19, %23 : vector<32x16xf32>
    %25 = vector.extract_strided_slice %5 {offsets = [0, 1], sizes = [32, 1], strides = [1, 1]} : vector<32x3xf32> to vector<32x1xf32>
    %c0_26 = arith.constant 0 : index
    %c2_27 = arith.constant 2 : index
    %26 = vector.load %arg11[%c0_26, %c2_27] : memref<32x20xf32, #tpu.memory_space<vmem>>, vector<32x16xf32>
    %27 = vector.broadcast %25 : vector<32x1xf32> to vector<32x16xf32>
    %28 = arith.mulf %27, %26 : vector<32x16xf32>
    %29 = arith.addf %24, %28 : vector<32x16xf32>
    %30 = vector.extract_strided_slice %5 {offsets = [0, 2], sizes = [32, 1], strides = [1, 1]} : vector<32x3xf32> to vector<32x1xf32>
    %c0_28 = arith.constant 0 : index
    %c4 = arith.constant 4 : index
    %31 = vector.load %arg11[%c0_28, %c4] : memref<32x20xf32, #tpu.memory_space<vmem>>, vector<32x16xf32>
    %32 = vector.broadcast %30 : vector<32x1xf32> to vector<32x16xf32>
    %33 = arith.mulf %32, %31 : vector<32x16xf32>
    %34 = arith.addf %29, %33 : vector<32x16xf32>
    %cst_29 = arith.constant dense<0.000000e+00> : vector<32x16xf32>
    %35 = tpu.matmul %4, %34, %cst_29 {dimension_numbers = #tpu.dot_dimension_numbers<[1], [0], [0], [1], [0, 0, 1, 1], [], []>} : vector<32x32xf32>, vector<32x16xf32>, vector<32x16xf32> -> vector<32x16xf32>
    %cst_30 = arith.constant dense<0.000000e+00> : vector<32xf32>
    %36 = vector.multi_reduction <add>, %35, %cst_30 [1] : vector<32x16xf32> to vector<32xf32>
    %37 = vector.shape_cast %36 : vector<32xf32> to vector<32x1xf32>
    %cst_31 = arith.constant 3.906250e-03 : f32
    %38 = vector.broadcast %cst_31 : f32 to vector<32x1xf32>
    %39 = arith.mulf %37, %38 : vector<32x1xf32>
    %40 = vector.broadcast %39 : vector<32x1xf32> to vector<32x16xf32>
    %41 = arith.subf %34, %40 : vector<32x16xf32>
    %42 = arith.mulf %41, %41 : vector<32x16xf32>
    %cst_32 = arith.constant dense<0.000000e+00> : vector<32x16xf32>
    %43 = tpu.matmul %4, %42, %cst_32 {dimension_numbers = #tpu.dot_dimension_numbers<[1], [0], [0], [1], [0, 0, 1, 1], [], []>} : vector<32x32xf32>, vector<32x16xf32>, vector<32x16xf32> -> vector<32x16xf32>
    %cst_33 = arith.constant dense<0.000000e+00> : vector<32xf32>
    %44 = vector.multi_reduction <add>, %43, %cst_33 [1] : vector<32x16xf32> to vector<32xf32>
    %45 = vector.shape_cast %44 : vector<32xf32> to vector<32x1xf32>
    %cst_34 = arith.constant 3.906250e-03 : f32
    %46 = vector.broadcast %cst_34 : f32 to vector<32x1xf32>
    %47 = arith.mulf %45, %46 : vector<32x1xf32>
    %cst_35 = arith.constant 9.99999974E-6 : f32
    %48 = vector.broadcast %cst_35 : f32 to vector<32x1xf32>
    %49 = arith.addf %47, %48 : vector<32x1xf32>
    %50 = math.rsqrt %49 : vector<32x1xf32>
    %51 = vector.broadcast %50 : vector<32x1xf32> to vector<32x16xf32>
    %52 = arith.mulf %41, %51 : vector<32x16xf32>
    %53 = vector.broadcast %6 : vector<32x1xf32> to vector<32x16xf32>
    %54 = arith.mulf %52, %53 : vector<32x16xf32>
    %55 = vector.broadcast %7 : vector<32x1xf32> to vector<32x16xf32>
    %56 = arith.addf %54, %55 : vector<32x16xf32>
    %57 = arith.negf %56 : vector<32x16xf32>
    %58 = math.exp %57 : vector<32x16xf32>
    %cst_36 = arith.constant 1.000000e+00 : f32
    %59 = vector.broadcast %cst_36 : f32 to vector<32x16xf32>
    %60 = arith.addf %59, %58 : vector<32x16xf32>
    %61 = arith.divf %59, %60 : vector<32x16xf32>
    %cst_37 = arith.constant 0.000000e+00 : f32
    %62 = vector.broadcast %cst_37 : f32 to vector<32x2xf32>
    %c0_38 = arith.constant 0 : index
    %c0_39 = arith.constant 0 : index
    %63 = vector.load %arg12[%c0_38, %c0_39] : memref<32x20xf32, #tpu.memory_space<vmem>>, vector<32x2xf32>
    tpu.vector_store %arg12[%c0_38, %c0_39], %62 {strides = array<i32>} : memref<32x20xf32, #tpu.memory_space<vmem>>, vector<32x2xf32>,
    %cst_40 = arith.constant 0.000000e+00 : f32
    %64 = vector.broadcast %cst_40 : f32 to vector<32x2xf32>
    %c0_41 = arith.constant 0 : index
    %c18_42 = arith.constant 18 : index
    %65 = vector.load %arg12[%c0_41, %c18_42] : memref<32x20xf32, #tpu.memory_space<vmem>>, vector<32x2xf32>
    tpu.vector_store %arg12[%c0_41, %c18_42], %64 {strides = array<i32>} : memref<32x20xf32, #tpu.memory_space<vmem>>, vector<32x2xf32>,
    %c0_43 = arith.constant 0 : index
    %c2_44 = arith.constant 2 : index
    %66 = vector.load %arg12[%c0_43, %c2_44] : memref<32x20xf32, #tpu.memory_space<vmem>>, vector<32x16xf32>
    tpu.vector_store %arg12[%c0_43, %c2_44], %9 {strides = array<i32>} : memref<32x20xf32, #tpu.memory_space<vmem>>, vector<32x16xf32>,
    %cst_45 = arith.constant 0.000000e+00 : f32
    %67 = vector.broadcast %cst_45 : f32 to vector<32x16xf32>
    %68 = vector.extract_strided_slice %5 {offsets = [0, 0], sizes = [32, 1], strides = [1, 1]} : vector<32x3xf32> to vector<32x1xf32>
    %c0_46 = arith.constant 0 : index
    %c0_47 = arith.constant 0 : index
    %69 = vector.load %arg12[%c0_46, %c0_47] : memref<32x20xf32, #tpu.memory_space<vmem>>, vector<32x16xf32>
    %70 = vector.broadcast %68 : vector<32x1xf32> to vector<32x16xf32>
    %71 = arith.mulf %70, %69 : vector<32x16xf32>
    %72 = arith.addf %67, %71 : vector<32x16xf32>
    %73 = vector.extract_strided_slice %5 {offsets = [0, 1], sizes = [32, 1], strides = [1, 1]} : vector<32x3xf32> to vector<32x1xf32>
    %c0_48 = arith.constant 0 : index
    %c2_49 = arith.constant 2 : index
    %74 = vector.load %arg12[%c0_48, %c2_49] : memref<32x20xf32, #tpu.memory_space<vmem>>, vector<32x16xf32>
    %75 = vector.broadcast %73 : vector<32x1xf32> to vector<32x16xf32>
    %76 = arith.mulf %75, %74 : vector<32x16xf32>
    %77 = arith.addf %72, %76 : vector<32x16xf32>
    %78 = vector.extract_strided_slice %5 {offsets = [0, 2], sizes = [32, 1], strides = [1, 1]} : vector<32x3xf32> to vector<32x1xf32>
    %c0_50 = arith.constant 0 : index
    %c4_51 = arith.constant 4 : index
    %79 = vector.load %arg12[%c0_50, %c4_51] : memref<32x20xf32, #tpu.memory_space<vmem>>, vector<32x16xf32>
    %80 = vector.broadcast %78 : vector<32x1xf32> to vector<32x16xf32>
    %81 = arith.mulf %80, %79 : vector<32x16xf32>
    %82 = arith.addf %77, %81 : vector<32x16xf32>
    %cst_52 = arith.constant dense<0.000000e+00> : vector<32x16xf32>
    %83 = tpu.matmul %4, %82, %cst_52 {dimension_numbers = #tpu.dot_dimension_numbers<[1], [0], [0], [1], [0, 0, 1, 1], [], []>} : vector<32x32xf32>, vector<32x16xf32>, vector<32x16xf32> -> vector<32x16xf32>
    %cst_53 = arith.constant dense<0.000000e+00> : vector<32xf32>
    %84 = vector.multi_reduction <add>, %83, %cst_53 [1] : vector<32x16xf32> to vector<32xf32>
    %85 = vector.shape_cast %84 : vector<32xf32> to vector<32x1xf32>
    %cst_54 = arith.constant 3.906250e-03 : f32
    %86 = vector.broadcast %cst_54 : f32 to vector<32x1xf32>
    %87 = arith.mulf %85, %86 : vector<32x1xf32>
    %88 = vector.broadcast %87 : vector<32x1xf32> to vector<32x16xf32>
    %89 = arith.subf %82, %88 : vector<32x16xf32>
    %90 = arith.mulf %89, %89 : vector<32x16xf32>
    %cst_55 = arith.constant dense<0.000000e+00> : vector<32x16xf32>
    %91 = tpu.matmul %4, %90, %cst_55 {dimension_numbers = #tpu.dot_dimension_numbers<[1], [0], [0], [1], [0, 0, 1, 1], [], []>} : vector<32x32xf32>, vector<32x16xf32>, vector<32x16xf32> -> vector<32x16xf32>
    %cst_56 = arith.constant dense<0.000000e+00> : vector<32xf32>
    %92 = vector.multi_reduction <add>, %91, %cst_56 [1] : vector<32x16xf32> to vector<32xf32>
    %93 = vector.shape_cast %92 : vector<32xf32> to vector<32x1xf32>
    %cst_57 = arith.constant 3.906250e-03 : f32
    %94 = vector.broadcast %cst_57 : f32 to vector<32x1xf32>
    %95 = arith.mulf %93, %94 : vector<32x1xf32>
    %cst_58 = arith.constant 9.99999974E-6 : f32
    %96 = vector.broadcast %cst_58 : f32 to vector<32x1xf32>
    %97 = arith.addf %95, %96 : vector<32x1xf32>
    %98 = math.rsqrt %97 : vector<32x1xf32>
    %99 = vector.broadcast %98 : vector<32x1xf32> to vector<32x16xf32>
    %100 = arith.mulf %89, %99 : vector<32x16xf32>
    %101 = vector.broadcast %6 : vector<32x1xf32> to vector<32x16xf32>
    %102 = arith.mulf %100, %101 : vector<32x16xf32>
    %103 = vector.broadcast %7 : vector<32x1xf32> to vector<32x16xf32>
    %104 = arith.addf %102, %103 : vector<32x16xf32>
    %105 = arith.negf %104 : vector<32x16xf32>
    %106 = math.exp %105 : vector<32x16xf32>
    %cst_59 = arith.constant 1.000000e+00 : f32
    %107 = vector.broadcast %cst_59 : f32 to vector<32x16xf32>
    %108 = arith.addf %107, %106 : vector<32x16xf32>
    %109 = arith.divf %107, %108 : vector<32x16xf32>
    %c0_60 = arith.constant 0 : index
    %c0_61 = arith.constant 0 : index
    %110 = vector.load %arg7[%c0_60, %c0_61] : memref<32x1xf32, #tpu.memory_space<vmem>>, vector<32x1xf32>
    %111 = arith.mulf %110, %13 : vector<32x1xf32>
    %112 = arith.negf %111 : vector<32x1xf32>
    %113 = math.exp %112 : vector<32x1xf32>
    %cst_62 = arith.constant 1.000000e+00 : f32
    %114 = vector.broadcast %cst_62 : f32 to vector<32x1xf32>
    %115 = arith.addf %114, %113 : vector<32x1xf32>
    %116 = arith.divf %114, %115 : vector<32x1xf32>
    %c0_63 = arith.constant 0 : index
    %117 = memref.load %arg1[%c0_63] : memref<3xf32, #tpu.memory_space<smem>>
    %c1 = arith.constant 1 : index
    %118 = memref.load %arg1[%c1] : memref<3xf32, #tpu.memory_space<smem>>
    %c2_64 = arith.constant 2 : index
    %119 = memref.load %arg1[%c2_64] : memref<3xf32, #tpu.memory_space<smem>>
    %120 = vector.broadcast %118 : f32 to vector<32x16xf32>
    %121 = arith.mulf %120, %61 : vector<32x16xf32>
    %cst_65 = arith.constant 1.600000e+01 : f32
    %122 = vector.broadcast %cst_65 : f32 to vector<16x256xf32>
    %123 = arith.mulf %2, %122 : vector<16x256xf32>
    %cst_66 = arith.constant dense<0.000000e+00> : vector<32x256xf32>
    %124 = tpu.matmul %121, %123, %cst_66 {dimension_numbers = #tpu.dot_dimension_numbers<[1], [0], [0], [1], [0, 0, 1, 1], [], []>} : vector<32x16xf32>, vector<16x256xf32>, vector<32x256xf32> -> vector<32x256xf32>
    %cst_67 = arith.constant 1.600000e+01 : f32
    %125 = vector.broadcast %cst_67 : f32 to vector<16x256xf32>
    %126 = arith.mulf %3, %125 : vector<16x256xf32>
    %cst_68 = arith.constant dense<0.000000e+00> : vector<32x256xf32>
    %127 = tpu.matmul %109, %126, %cst_68 {dimension_numbers = #tpu.dot_dimension_numbers<[1], [0], [0], [1], [0, 0, 1, 1], [], []>} : vector<32x16xf32>, vector<16x256xf32>, vector<32x256xf32> -> vector<32x256xf32>
    %128 = vector.broadcast %117 : f32 to vector<32x1xf32>
    %129 = arith.mulf %128, %116 : vector<32x1xf32>
    %130 = vector.broadcast %119 : f32 to vector<32x1xf32>
    %131 = arith.addf %129, %130 : vector<32x1xf32>
    %132 = arith.mulf %124, %127 : vector<32x256xf32>
    %133 = vector.broadcast %131 : vector<32x1xf32> to vector<32x256xf32>
    %134 = arith.addf %132, %133 : vector<32x256xf32>
    %135 = arith.mulf %1, %134 : vector<32x256xf32>
    %c0_69 = arith.constant 0 : index
    %c0_70 = arith.constant 0 : index
    %c0_71 = arith.constant 0 : index
    %136 = vector.load %arg10[%c0_69, %c0_70, %c0_71] : memref<1x32x256xf32, #tpu.memory_space<vmem>>, vector<1x32x256xf32>
    %137 = vector.shape_cast %136 : vector<1x32x256xf32> to vector<32x256xf32>
    %138 = vector.shape_cast %135 : vector<32x256xf32> to vector<1x32x256xf32>
    tpu.vector_store %arg10[%c0_69, %c0_70, %c0_71], %138 {strides = array<i32>} : memref<1x32x256xf32, #tpu.memory_space<vmem>>, vector<1x32x256xf32>,
    return
  }
  func.func @transform_0(%arg0: i32) -> i32 {
    %c0_i32 = arith.constant 0 : i32
    %c0_i32_0 = arith.constant 0 : i32
    return %c0_i32 : i32
  }
  func.func @transform_1(%arg0: i32) -> (i32, i32, i32) {
    %c0_i32 = arith.constant 0 : i32
    %c0_i32_0 = arith.constant 0 : i32
    %c0_i32_1 = arith.constant 0 : i32
    return %arg0, %c0_i32, %c0_i32_0 : i32, i32, i32
  }
  func.func @transform_2(%arg0: i32) -> (i32, i32) {
    %c0_i32 = arith.constant 0 : i32
    %c0_i32_0 = arith.constant 0 : i32
    %c0_i32_1 = arith.constant 0 : i32
    return %c0_i32, %c0_i32_0 : i32, i32
  }
  func.func @transform_3(%arg0: i32) -> (i32, i32) {
    %c0_i32 = arith.constant 0 : i32
    %c0_i32_0 = arith.constant 0 : i32
    %c0_i32_1 = arith.constant 0 : i32
    return %c0_i32, %c0_i32_0 : i32, i32
  }
  func.func @transform_4(%arg0: i32) -> (i32, i32) {
    %c0_i32 = arith.constant 0 : i32
    %c0_i32_0 = arith.constant 0 : i32
    %c0_i32_1 = arith.constant 0 : i32
    return %c0_i32, %c0_i32_0 : i32, i32
  }
  func.func @transform_5(%arg0: i32) -> (i32, i32) {
    %c0_i32 = arith.constant 0 : i32
    %c0_i32_0 = arith.constant 0 : i32
    %c0_i32_1 = arith.constant 0 : i32
    return %c0_i32, %c0_i32_0 : i32, i32
  }
  func.func @transform_6(%arg0: i32) -> (i32, i32) {
    %c0_i32 = arith.constant 0 : i32
    %c0_i32_0 = arith.constant 0 : i32
    %c0_i32_1 = arith.constant 0 : i32
    return %c0_i32, %c0_i32_0 : i32, i32
  }
  func.func @transform_7(%arg0: i32) -> (i32, i32) {
    %c0_i32 = arith.constant 0 : i32
    %c0_i32_0 = arith.constant 0 : i32
    %c0_i32_1 = arith.constant 0 : i32
    return %c0_i32, %c0_i32_0 : i32, i32
  }
  func.func @transform_8(%arg0: i32) -> (i32, i32) {
    %c0_i32 = arith.constant 0 : i32
    %c0_i32_0 = arith.constant 0 : i32
    %c0_i32_1 = arith.constant 0 : i32
    return %c0_i32, %c0_i32_0 : i32, i32
  }
  func.func @transform_9(%arg0: i32) -> (i32, i32, i32) {
    %c0_i32 = arith.constant 0 : i32
    %c0_i32_0 = arith.constant 0 : i32
    %c0_i32_1 = arith.constant 0 : i32
    return %arg0, %c0_i32, %c0_i32_0 : i32, i32, i32
  }
}

</mosaic_0001>

<llo_original>
// kernel: tpu_custom_call.1
$region0: #{tpu_custom_call.1}
  #allocation0 [shape = 'u32[]', space=smem, size = 0x4, offset = 0x4, fixed_abs, tag = 'smem constant byte address 0x4 - core index']
  #allocation1 [shape = 'u32[144,128]{1,0:T(1,128)}', space=vmem, size = 0x12000, scoped, tag = 'internal scratch']
  #allocation2 [shape = 'f32[32,20]{1,0:T(8,128)}', space=vmem, size = 0x4000, scoped, tag = 'scratch operand']
  #allocation3 [shape = 'f32[32,20]{1,0:T(8,128)}', space=vmem, size = 0x4000, scoped, tag = 'scratch operand']
  %s0 = inlined_call_operand.vmem [shape: f32[3], index: 0, kind: input, shape index: {}]
  %s1 = inlined_call_operand.vmem [shape: f32[2,32,256], index: 1, kind: input, shape index: {}]
  %s2 = inlined_call_operand.hbm [shape: f32[16,256], index: 2, kind: input, shape index: {}]
  %s3 = inlined_call_operand.hbm [shape: f32[16,256], index: 3, kind: input, shape index: {}]
  %s4 = inlined_call_operand.hbm [shape: f32[32,32], index: 4, kind: input, shape index: {}]
  %s5 = inlined_call_operand.vmem [shape: f32[32,3], index: 5, kind: input, shape index: {}]
  %s6 = inlined_call_operand.vmem [shape: f32[32,1], index: 6, kind: input, shape index: {}]
  %s7 = inlined_call_operand.vmem [shape: f32[32,1], index: 7, kind: input, shape index: {}]
  %s8 = inlined_call_operand.vmem [shape: f32[32,1], index: 8, kind: input, shape index: {}]
  %s9 = inlined_call_operand.hbm [shape: f32[2,32,256], index: 9, kind: output, shape index: {}]
  %s10 = sld [smem:[#allocation0]]
  $region85: #{tpu_custom_call.1} parent=0
    _
  %s12 = ssub.s32 1, %s10
  %s13 = scalar_select 0, %s12, %s10
  $region1: #{tpu_custom_call.1} parent=0
    #allocation4 [shape = 'u8[512]{0}', space=smem, size = 0x200, scoped, tag = 'input window, operand 0, single buffered']
    #allocation5 [shape = 's32[2]{0}', space=sflag, size = 0x8, scoped, tag = 'scoped memory for tpu_custom_call.1']
    #allocation6 [shape = 's32[2]{0}', space=sflag, size = 0x8, scoped, tag = 'scoped memory for tpu_custom_call.1']
    #allocation7 [shape = 's32[2]{0}', space=sflag, size = 0x8, scoped, tag = 'scoped memory for tpu_custom_call.1']
    #allocation8 [shape = 'u8[16384]{0}', space=vmem, size = 0x4000, scoped, tag = 'input window, operand 2, single buffered']
    #allocation9 [shape = 'u8[16384]{0}', space=vmem, size = 0x4000, scoped, tag = 'input window, operand 3, single buffered']
    #allocation10 [shape = 's32[1]{0}', space=sflag, size = 0x4, scoped, tag = 'scoped memory for tpu_custom_call.1']
    #allocation11 [shape = 'u8[16384]{0}', space=vmem, size = 0x4000, scoped, tag = 'input window, operand 4, single buffered']
    #allocation12 [shape = 'u8[65536]{0}', space=vmem, size = 0x10000, scoped, tag = 'output window, operand 0']
    %14 = vsyncpa [#allocation7], 0
    %15 = vsyncpa [#allocation5], 0
    %16 = vsyncpa [#allocation10], 0
    %17 = vsyncpa [#allocation6], 0
    %s18 = scalar_lea.sflag [#allocation6], 1
    %19 = vsyncpa %s18, 0
    loop: start=0, step=1, limit=4
    $region2: #{tpu_custom_call.1} parent=1 // loop_pre_header
      _
    $region3: #{tpu_custom_call.1} parent=1 // loop_header
      %s21 = sphi 0, %s25
      %p22 = scmp.ge.s32.totalorder %s21, 4
      %s29 = sphi 0, %s29
      %s31 = sphi 0, %s29
      %s32 = sphi 0, %s31
      %s46 = sphi 0, %s32
      %s52 = sphi 0, %s54
      %s55 = sphi 0, %s52
      %s56 = sphi 0, %s55
      %s72 = sphi 0, %s56
      %s76 = sphi 0, %s76
      %s78 = sphi 0, %s76
      %s79 = sphi 0, %s78
      %s93 = sphi 0, %s79
      %s97 = sphi 0, %s97
      %s99 = sphi 0, %s97
      %s100 = sphi 0, %s99
      %s114 = sphi 0, %s100
      %s118 = sphi 0, %s118
      %s120 = sphi 0, %s118
      %s121 = sphi 0, %s120
      %s135 = sphi 0, %s121
      %s139 = sphi 0, %s139
      %s141 = sphi 0, %s139
      %s142 = sphi 0, %s141
      %s156 = sphi 0, %s142
      %s160 = sphi 0, %s160
      %s162 = sphi 0, %s160
      %s163 = sphi 0, %s162
      %s177 = sphi 0, %s163
      %s181 = sphi 0, %s181
      %s183 = sphi 0, %s181
      %s184 = sphi 0, %s183
      %s198 = sphi 0, %s184
      %s202 = sphi 0, %s202
      %s204 = sphi 0, %s202
      %s205 = sphi 0, %s204
      %s219 = sphi 0, %s205
      %s225 = sphi 0, %s227
      %s228 = sphi 0, %s225
      %s229 = sphi 0, %s228
      %s245 = sphi 0, %s229
    $region4: #{tpu_custom_call.1} parent=1 // loop_header_branch
      %24 = sbr.rel (%p22) target = $region8
    $region5: #{tpu_custom_call.1} parent=1 // loop_body
      %s26 = ssub.s32 %s21, 1
      %s27 = ssub.s32 %s21, 2
      %s28 = sadd.s32 %s21, 1
      %s30 = sadd.s32 %s29, 1
      %p33 = scmp.eq.s32.totalorder %s21, 1
      %p34 = scmp.ne.s32.totalorder %s29, %s31
      %p35 = scmp.eq.s32.totalorder %s21, 0
      %p36 = por %p34, %p35
      %p37 = scmp.ne.s32.totalorder %s29, %s31
      %p38 = scmp.eq.s32.totalorder %s26, 1
      %p39 = por %p37, %p38
      %p40 = scmp.ne.s32.totalorder %s31, %s32
      %p41 = scmp.eq.s32.totalorder %s26, 0
      %p42 = por %p40, %p41
      %p43 = scmp.ne.s32.totalorder %s31, %s32
      %p44 = scmp.eq.s32.totalorder %s27, 1
      %p45 = por %p43, %p44
      %p47 = scmp.ne.s32.totalorder %s32, %s46
      %p48 = scmp.eq.s32.totalorder %s27, 0
      %p49 = por %p47, %p48
      %s50 = ssub.s32 %s21, %s28
      %p51 = scmp.eq.s32.totalorder %s50, 0
      %s53 = sadd.s32 %s52, 1
      %s54 = scalar_select %p51, %s52, %s53
      %p57 = pneg %p51
      %p58 = scmp.eq.s32.totalorder %s21, 1
      %p59 = por %p57, %p58
      %p60 = scmp.ne.s32.totalorder %s52, %s55
      %p61 = scmp.eq.s32.totalorder %s21, 0
      %p62 = por %p60, %p61
      %p63 = scmp.ne.s32.totalorder %s52, %s55
      %p64 = scmp.eq.s32.totalorder %s26, 1
      %p65 = por %p63, %p64
      %p66 = scmp.ne.s32.totalorder %s55, %s56
      %p67 = scmp.eq.s32.totalorder %s26, 0
      %p68 = por %p66, %p67
      %p69 = scmp.ne.s32.totalorder %s55, %s56
      %p70 = scmp.eq.s32.totalorder %s27, 1
      %p71 = por %p69, %p70
      %p73 = scmp.ne.s32.totalorder %s56, %s72
      %p74 = scmp.eq.s32.totalorder %s27, 0
      %p75 = por %p73, %p74
      %s77 = sadd.s32 %s76, 1
      %p80 = scmp.eq.s32.totalorder %s21, 1
      %p81 = scmp.ne.s32.totalorder %s76, %s78
      %p82 = scmp.eq.s32.totalorder %s21, 0
      %p83 = por %p81, %p82
      %p84 = scmp.ne.s32.totalorder %s76, %s78
      %p85 = scmp.eq.s32.totalorder %s26, 1
      %p86 = por %p84, %p85
      %p87 = scmp.ne.s32.totalorder %s78, %s79
      %p88 = scmp.eq.s32.totalorder %s26, 0
      %p89 = por %p87, %p88
      %p90 = scmp.ne.s32.totalorder %s78, %s79
      %p91 = scmp.eq.s32.totalorder %s27, 1
      %p92 = por %p90, %p91
      %p94 = scmp.ne.s32.totalorder %s79, %s93
      %p95 = scmp.eq.s32.totalorder %s27, 0
      %p96 = por %p94, %p95
      %s98 = sadd.s32 %s97, 1
      %p101 = scmp.eq.s32.totalorder %s21, 1
      %p102 = scmp.ne.s32.totalorder %s97, %s99
      %p103 = scmp.eq.s32.totalorder %s21, 0
      %p104 = por %p102, %p103
      %p105 = scmp.ne.s32.totalorder %s97, %s99
      %p106 = scmp.eq.s32.totalorder %s26, 1
      %p107 = por %p105, %p106
      %p108 = scmp.ne.s32.totalorder %s99, %s100
      %p109 = scmp.eq.s32.totalorder %s26, 0
      %p110 = por %p108, %p109
      %p111 = scmp.ne.s32.totalorder %s99, %s100
      %p112 = scmp.eq.s32.totalorder %s27, 1
      %p113 = por %p111, %p112
      %p115 = scmp.ne.s32.totalorder %s100, %s114
      %p116 = scmp.eq.s32.totalorder %s27, 0
      %p117 = por %p115, %p116
      %s119 = sadd.s32 %s118, 1
      %p122 = scmp.eq.s32.totalorder %s21, 1
      %p123 = scmp.ne.s32.totalorder %s118, %s120
      %p124 = scmp.eq.s32.totalorder %s21, 0
      %p125 = por %p123, %p124
      %p126 = scmp.ne.s32.totalorder %s118, %s120
      %p127 = scmp.eq.s32.totalorder %s26, 1
      %p128 = por %p126, %p127
      %p129 = scmp.ne.s32.totalorder %s120, %s121
      %p130 = scmp.eq.s32.totalorder %s26, 0
      %p131 = por %p129, %p130
      %p132 = scmp.ne.s32.totalorder %s120, %s121
      %p133 = scmp.eq.s32.totalorder %s27, 1
      %p134 = por %p132, %p133
      %p136 = scmp.ne.s32.totalorder %s121, %s135
      %p137 = scmp.eq.s32.totalorder %s27, 0
      %p138 = por %p136, %p137
      %s140 = sadd.s32 %s139, 1
      %p143 = scmp.eq.s32.totalorder %s21, 1
      %p144 = scmp.ne.s32.totalorder %s139, %s141
      %p145 = scmp.eq.s32.totalorder %s21, 0
      %p146 = por %p144, %p145
      %p147 = scmp.ne.s32.totalorder %s139, %s141
      %p148 = scmp.eq.s32.totalorder %s26, 1
      %p149 = por %p147, %p148
      %p150 = scmp.ne.s32.totalorder %s141, %s142
      %p151 = scmp.eq.s32.totalorder %s26, 0
      %p152 = por %p150, %p151
      %p153 = scmp.ne.s32.totalorder %s141, %s142
      %p154 = scmp.eq.s32.totalorder %s27, 1
      %p155 = por %p153, %p154
      %p157 = scmp.ne.s32.totalorder %s142, %s156
      %p158 = scmp.eq.s32.totalorder %s27, 0
      %p159 = por %p157, %p158
      %s161 = sadd.s32 %s160, 1
      %p164 = scmp.eq.s32.totalorder %s21, 1
      %p165 = scmp.ne.s32.totalorder %s160, %s162
      %p166 = scmp.eq.s32.totalorder %s21, 0
      %p167 = por %p165, %p166
      %p168 = scmp.ne.s32.totalorder %s160, %s162
      %p169 = scmp.eq.s32.totalorder %s26, 1
      %p170 = por %p168, %p169
      %p171 = scmp.ne.s32.totalorder %s162, %s163
      %p172 = scmp.eq.s32.totalorder %s26, 0
      %p173 = por %p171, %p172
      %p174 = scmp.ne.s32.totalorder %s162, %s163
      %p175 = scmp.eq.s32.totalorder %s27, 1
      %p176 = por %p174, %p175
      %p178 = scmp.ne.s32.totalorder %s163, %s177
      %p179 = scmp.eq.s32.totalorder %s27, 0
      %p180 = por %p178, %p179
      %s182 = sadd.s32 %s181, 1
      %p185 = scmp.eq.s32.totalorder %s21, 1
      %p186 = scmp.ne.s32.totalorder %s181, %s183
      %p187 = scmp.eq.s32.totalorder %s21, 0
      %p188 = por %p186, %p187
      %p189 = scmp.ne.s32.totalorder %s181, %s183
      %p190 = scmp.eq.s32.totalorder %s26, 1
      %p191 = por %p189, %p190
      %p192 = scmp.ne.s32.totalorder %s183, %s184
      %p193 = scmp.eq.s32.totalorder %s26, 0
      %p194 = por %p192, %p193
      %p195 = scmp.ne.s32.totalorder %s183, %s184
      %p196 = scmp.eq.s32.totalorder %s27, 1
      %p197 = por %p195, %p196
      %p199 = scmp.ne.s32.totalorder %s184, %s198
      %p200 = scmp.eq.s32.totalorder %s27, 0
      %p201 = por %p199, %p200
      %s203 = sadd.s32 %s202, 1
      %p206 = scmp.eq.s32.totalorder %s21, 1
      %p207 = scmp.ne.s32.totalorder %s202, %s204
      %p208 = scmp.eq.s32.totalorder %s21, 0
      %p209 = por %p207, %p208
      %p210 = scmp.ne.s32.totalorder %s202, %s204
      %p211 = scmp.eq.s32.totalorder %s26, 1
      %p212 = por %p210, %p211
      %p213 = scmp.ne.s32.totalorder %s204, %s205
      %p214 = scmp.eq.s32.totalorder %s26, 0
      %p215 = por %p213, %p214
      %p216 = scmp.ne.s32.totalorder %s204, %s205
      %p217 = scmp.eq.s32.totalorder %s27, 1
      %p218 = por %p216, %p217
      %p220 = scmp.ne.s32.totalorder %s205, %s219
      %p221 = scmp.eq.s32.totalorder %s27, 0
      %p222 = por %p220, %p221
      %s223 = ssub.s32 %s21, %s28
      %p224 = scmp.eq.s32.totalorder %s223, 0
      %s226 = sadd.s32 %s225, 1
      %s227 = scalar_select %p224, %s225, %s226
      %p230 = pneg %p224
      %p231 = scmp.eq.s32.totalorder %s21, 1
      %p232 = por %p230, %p231
      %p233 = scmp.ne.s32.totalorder %s225, %s228
      %p234 = scmp.eq.s32.totalorder %s21, 0
      %p235 = por %p233, %p234
      %p236 = scmp.ne.s32.totalorder %s225, %s228
      %p237 = scmp.eq.s32.totalorder %s26, 1
      %p238 = por %p236, %p237
      %p239 = scmp.ne.s32.totalorder %s228, %s229
      %p240 = scmp.eq.s32.totalorder %s26, 0
      %p241 = por %p239, %p240
      %p242 = scmp.ne.s32.totalorder %s228, %s229
      %p243 = scmp.eq.s32.totalorder %s27, 1
      %p244 = por %p242, %p243
      %p246 = scmp.ne.s32.totalorder %s229, %s245
      %p247 = scmp.eq.s32.totalorder %s27, 0
      %p248 = por %p246, %p247
      %p249 = scmp.le.s32.totalorder 1, %s21
      %p250 = scmp.lt.s32.totalorder %s21, 3
      %p251 = pnand %p249, %p250
      %p252 = pneg %p251
      // Predicated region
      $region9: #{tpu_custom_call.1} parent=5 // pred_check
        _
      $region10: #{tpu_custom_call.1} parent=5 // pred_check_branch
        %254 = sbr.rel (%p251) target = $region12
      $region11: #{tpu_custom_call.1} parent=5 // pred_region
        %s255 = ssub.s32 %s21, 1
        // Predicated region
        $region13: #{tpu_custom_call.1} parent=11 // pred_check
          %p256 = pneg %p42
        $region14: #{tpu_custom_call.1} parent=11 // pred_check_branch
          %258 = sbr.rel (%p256) target = $region16
        $region15: #{tpu_custom_call.1} parent=11 // pred_region
          %s260 = ssub.s32 16, 16
          %261 = vsyncadd [#allocation7], %s260
          %s263 = sshll.u32 %s0, 4
          %s264 = int_to_ptr.vmem [resolvable:$true] %s263
          %266 = dma.vmem_to_smem %s264, 16, [#allocation4], [#allocation7]
        $region16: #{tpu_custom_call.1} parent=11 // pred_fallthru
          _
        // Predicated region
        $region17: #{tpu_custom_call.1} parent=11 // pred_check
          %p267 = pneg %p89
        $region18: #{tpu_custom_call.1} parent=11 // pred_check_branch
          %269 = sbr.rel (%p267) target = $region20
        $region19: #{tpu_custom_call.1} parent=11 // pred_region
          %s271 = ssub.s32 512, 512
          %272 = vsyncadd [#allocation5], %s271
          %s273 = sshll.u32 [#allocation8], 4
          %s274 = int_to_ptr.vmem [resolvable:$true] %s273
          %279 = dma.hbm_to_vmem [thread:$0]  %s2, 512, %s274, [#allocation5], 256, 256, 16
        $region20: #{tpu_custom_call.1} parent=11 // pred_fallthru
          _
        // Predicated region
        $region21: #{tpu_custom_call.1} parent=11 // pred_check
          %p280 = pneg %p110
        $region22: #{tpu_custom_call.1} parent=11 // pred_check_branch
          %282 = sbr.rel (%p280) target = $region24
        $region23: #{tpu_custom_call.1} parent=11 // pred_region
          %s284 = ssub.s32 512, 512
          %285 = vsyncadd [#allocation10], %s284
          %s286 = sshll.u32 [#allocation9], 4
          %s287 = int_to_ptr.vmem [resolvable:$true] %s286
          %292 = dma.hbm_to_vmem [thread:$0]  %s3, 512, %s287, [#allocation10], 256, 256, 16
        $region24: #{tpu_custom_call.1} parent=11 // pred_fallthru
          _
        // Predicated region
        $region25: #{tpu_custom_call.1} parent=11 // pred_check
          %p293 = pneg %p131
        $region26: #{tpu_custom_call.1} parent=11 // pred_check_branch
          %295 = sbr.rel (%p293) target = $region28
        $region27: #{tpu_custom_call.1} parent=11 // pred_region
          %s297 = ssub.s32 512, 512
          %298 = vsyncadd [#allocation10], %s297
          %s299 = sshll.u32 [#allocation11], 4
          %s300 = int_to_ptr.vmem [resolvable:$true] %s299
          %305 = dma.hbm_to_vmem [thread:$0]  %s4, 512, %s300, [#allocation10], 128, 128, 8
        $region28: #{tpu_custom_call.1} parent=11 // pred_fallthru
          _
        // Predicated region
        $region29: #{tpu_custom_call.1} parent=11 // pred_check
          %p306 = pneg %p152
        $region30: #{tpu_custom_call.1} parent=11 // pred_check_branch
          %308 = sbr.rel (%p306) target = $region32
        $region31: #{tpu_custom_call.1} parent=11 // pred_region
          _
        $region32: #{tpu_custom_call.1} parent=11 // pred_fallthru
          _
        // Predicated region
        $region33: #{tpu_custom_call.1} parent=11 // pred_check
          %p309 = pneg %p173
        $region34: #{tpu_custom_call.1} parent=11 // pred_check_branch
          %311 = sbr.rel (%p309) target = $region36
        $region35: #{tpu_custom_call.1} parent=11 // pred_region
          _
        $region36: #{tpu_custom_call.1} parent=11 // pred_fallthru
          _
        // Predicated region
        $region37: #{tpu_custom_call.1} parent=11 // pred_check
          %p312 = pneg %p194
        $region38: #{tpu_custom_call.1} parent=11 // pred_check_branch
          %314 = sbr.rel (%p312) target = $region40
        $region39: #{tpu_custom_call.1} parent=11 // pred_region
          _
        $region40: #{tpu_custom_call.1} parent=11 // pred_fallthru
          _
        // Predicated region
        $region41: #{tpu_custom_call.1} parent=11 // pred_check
          %p315 = pneg %p215
        $region42: #{tpu_custom_call.1} parent=11 // pred_check_branch
          %317 = sbr.rel (%p315) target = $region44
        $region43: #{tpu_custom_call.1} parent=11 // pred_region
          _
        $region44: #{tpu_custom_call.1} parent=11 // pred_fallthru
          _
      $region12: #{tpu_custom_call.1} parent=5 // pred_fallthru
        _
      %p318 = scmp.lt.s32.totalorder %s21, 2
      // Predicated region
      $region45: #{tpu_custom_call.1} parent=5 // pred_check
        %p319 = pneg %p318
      $region46: #{tpu_custom_call.1} parent=5 // pred_check_branch
        %321 = sbr.rel (%p319) target = $region48
      $region47: #{tpu_custom_call.1} parent=5 // pred_region
        // Predicated region
        $region49: #{tpu_custom_call.1} parent=47 // pred_check
          %p322 = pneg %p62
        $region50: #{tpu_custom_call.1} parent=47 // pred_check_branch
          %324 = sbr.rel (%p322) target = $region52
        $region51: #{tpu_custom_call.1} parent=47 // pred_region
          %p325 = scmp.lt.s32.totalorder %s21, 1
          %s326 = scalar_select %p325, %s21, 1
          %s327 = smul.addr %s326, 8
          %s328 = smul.addr %s327, 8
          %s329 = scalar_lea.vmem %s1, %s328
        $region52: #{tpu_custom_call.1} parent=47 // pred_fallthru
          _
      $region48: #{tpu_custom_call.1} parent=5 // pred_fallthru
        _
      %p330 = scmp.le.s32.totalorder 1, %s21
      %p331 = scmp.lt.s32.totalorder %s21, 3
      %p332 = pnand %p330, %p331
      %p333 = pneg %p332
      // Predicated region
      $region53: #{tpu_custom_call.1} parent=5 // pred_check
        _
      $region54: #{tpu_custom_call.1} parent=5 // pred_check_branch
        %335 = sbr.rel (%p332) target = $region56
      $region55: #{tpu_custom_call.1} parent=5 // pred_region
        %s336 = ssub.s32 %s21, 1
        // Predicated region
        $region57: #{tpu_custom_call.1} parent=55 // pred_check
          %p337 = pneg %p42
        $region58: #{tpu_custom_call.1} parent=55 // pred_check_branch
          %339 = sbr.rel (%p337) target = $region60
        $region59: #{tpu_custom_call.1} parent=55 // pred_region
          %340 = dma.done [#allocation7], 16
        $region60: #{tpu_custom_call.1} parent=55 // pred_fallthru
          _
        // Predicated region
        $region61: #{tpu_custom_call.1} parent=55 // pred_check
          %p341 = pneg %p89
        $region62: #{tpu_custom_call.1} parent=55 // pred_check_branch
          %343 = sbr.rel (%p341) target = $region64
        $region63: #{tpu_custom_call.1} parent=55 // pred_region
          %344 = dma.done [#allocation5], 512
        $region64: #{tpu_custom_call.1} parent=55 // pred_fallthru
          _
        // Predicated region
        $region65: #{tpu_custom_call.1} parent=55 // pred_check
          %p345 = pneg %p110
        $region66: #{tpu_custom_call.1} parent=55 // pred_check_branch
          %347 = sbr.rel (%p345) target = $region68
        $region67: #{tpu_custom_call.1} parent=55 // pred_region
          %348 = dma.done [#allocation10], 512
        $region68: #{tpu_custom_call.1} parent=55 // pred_fallthru
          _
        // Predicated region
        $region69: #{tpu_custom_call.1} parent=55 // pred_check
          %p349 = pneg %p131
        $region70: #{tpu_custom_call.1} parent=55 // pred_check_branch
          %351 = sbr.rel (%p349) target = $region72
        $region71: #{tpu_custom_call.1} parent=55 // pred_region
          %352 = dma.done [#allocation10], 512
        $region72: #{tpu_custom_call.1} parent=55 // pred_fallthru
          _
        %353 = sfence
        %p354 = pneg %p42
        %p355 = pneg %p39
        %p356 = scmp.lt.s32.totalorder %s26, 1
        %s357 = scalar_select %p356, %s26, 1
        %s358 = smul.addr %s357, 8
        %s359 = smul.addr %s358, 8
        %s360 = scalar_lea.vmem %s1, %s359
        %p361 = pneg %p68
        %p362 = pneg %p65
        %p363 = pneg %p89
        %p364 = pneg %p86
        %p365 = pneg %p110
        %p366 = pneg %p107
        %p367 = pneg %p131
        %p368 = pneg %p128
        %p369 = pneg %p152
        %p370 = pneg %p149
        %p371 = pneg %p173
        %p372 = pneg %p170
        %p373 = pneg %p194
        %p374 = pneg %p191
        %p375 = pneg %p215
        %p376 = pneg %p212
        %p377 = pneg %p241
        %p378 = pneg %p238
        %s379 = sand.u32 %s228, 1
        %s380 = scalar_lea.sflag [#allocation6], %s379
        %s381 = sand.u32 %s228, 1
        %s382 = smul.addr %s381, 64
        %s383 = scalar_lea.vmem [#allocation12], %s382
        %p384 = scmp.lt.s32.totalorder %s26, 1
        %s385 = scalar_select %p384, %s26, 1
        %s386 = smul.addr %s385, 8
        %s387 = smul.addr %s386, 8
        %s388 = scalar_lea.vmem %s1, %s387
        %v389 = vld [vmem:[%s388] sm:$0xff]
        %v390 = vld [vmem:[%s388 + $0x8] sm:$0xff]
        %v391 = vld [vmem:[%s388 + $0x10] sm:$0xff]
        %v392 = vld [vmem:[%s388 + $0x18] sm:$0xff]
        %v393 = vld [vmem:[%s388 + $0x20] sm:$0xff]
        %v394 = vld [vmem:[%s388 + $0x28] sm:$0xff]
        %v395 = vld [vmem:[%s388 + $0x30] sm:$0xff]
        %v396 = vld [vmem:[%s388 + $0x38] sm:$0xff]
        %v397 = vld [vmem:[#allocation8] sm:$0xff]
        %v398 = vld [vmem:[#allocation8 + $0x8] sm:$0xff]
        %v399 = vld [vmem:[#allocation8 + $0x10] sm:$0xff]
        %v400 = vld [vmem:[#allocation8 + $0x18] sm:$0xff]
        %v401 = vld [vmem:[#allocation9] sm:$0xff]
        %v402 = vld [vmem:[#allocation9 + $0x8] sm:$0xff]
        %v403 = vld [vmem:[#allocation9 + $0x10] sm:$0xff]
        %v404 = vld [vmem:[#allocation9 + $0x18] sm:$0xff]
        %v405 = vld [vmem:[#allocation11] sm:$0xff]
        %v406 = vld [vmem:[#allocation11 + $0x8] sm:$0xff]
        %v407 = vld [vmem:[#allocation11 + $0x10] sm:$0xff]
        %v408 = vld [vmem:[#allocation11 + $0x18] sm:$0xff]
        %v409 = vld [vmem:[%s5] sm:$0xff]
        %v410 = vld [vmem:[%s5 + $0x8] sm:$0xff]
        %v411 = vld [vmem:[%s5 + $0x10] sm:$0xff]
        %v412 = vld [vmem:[%s5 + $0x18] sm:$0xff]
        %v413 = vld [vmem:[%s7] sm:$0xff]
        %v414 = vld [vmem:[%s7 + $0x8] sm:$0xff]
        %v415 = vld [vmem:[%s7 + $0x10] sm:$0xff]
        %v416 = vld [vmem:[%s7 + $0x18] sm:$0xff]
        %v417 = vld [vmem:[%s8] sm:$0xff]
        %v418 = vld [vmem:[%s8 + $0x8] sm:$0xff]
        %v419 = vld [vmem:[%s8 + $0x10] sm:$0xff]
        %v420 = vld [vmem:[%s8 + $0x18] sm:$0xff]
        %421 = vmatprep.subr.mxu0 %v398
        %422 = vmatpush1.xpose.msra.mxu0 %v397
        %423 = vmatprep.subr.mxu0 %v400
        %424 = vmatpush1.xpose.msra.mxu0 %v399
        %425 = vmatprep.subr.mxu0 0.0
        %426 = vmatpush1.xpose.msra.mxu0 0.0
        %427 = vmatprep.subr.mxu0 0.0
        %428 = vmatpush1.xpose.msra.mxu0 0.0
        %429 = vmatprep.subr.mxu0 0.0
        %430 = vmatpush1.xpose.msra.mxu0 0.0
        %431 = vmatprep.subr.mxu0 0.0
        %432 = vmatpush1.xpose.msra.mxu0 0.0
        %433 = vmatprep.subr.mxu0 0.0
        %434 = vmatpush1.xpose.msra.mxu0 0.0
        %435 = vmatprep.subr.mxu0 0.0
        %436 = vmatpush1.xpose.msra.mxu0 0.0
        %437 = vmatprep.subr.mxu0 0.0
        %438 = vmatpush1.xpose.msra.mxu0 0.0
        %439 = vmatprep.subr.mxu0 0.0
        %440 = vmatpush1.xpose.msra.mxu0 0.0
        %441 = vmatprep.subr.mxu0 0.0
        %442 = vmatpush1.xpose.msra.mxu0 0.0
        %443 = vmatprep.subr.mxu0 0.0
        %444 = vmatpush1.xpose.msra.mxu0 0.0
        %445 = vmatprep.subr.mxu0 0.0
        %446 = vmatpush1.xpose.msra.mxu0 0.0
        %447 = vmatprep.subr.mxu0 0.0
        %448 = vmatpush1.xpose.msra.mxu0 0.0
        %449 = vmatprep.subr.mxu0 0.0
        %450 = vmatpush1.xpose.msra.mxu0 0.0
        %451 = vmatprep.subr.mxu0 0.0
        %452 = vmatpush1.xpose.msra.mxu0 0.0
        %453 = vmatprep.subr.mxu0 0.0
        %454 = vmatpush1.xpose.msra.mxu0 0.0
        %455 = vmatprep.subr.mxu0 0.0
        %456 = vmatpush1.xpose.msra.mxu0 0.0
        %457 = vmatprep.subr.mxu0 0.0
        %458 = vmatpush1.xpose.msra.mxu0 0.0
        %459 = vmatprep.subr.mxu0 0.0
        %460 = vmatpush1.xpose.msra.mxu0 0.0
        %461 = vmatprep.subr.mxu0 0.0
        %462 = vmatpush1.xpose.msra.mxu0 0.0
        %463 = vmatprep.subr.mxu0 0.0
        %464 = vmatpush1.xpose.msra.mxu0 0.0
        %465 = vmatprep.subr.mxu0 0.0
        %466 = vmatpush1.xpose.msra.mxu0 0.0
        %467 = vmatprep.subr.mxu0 0.0
        %468 = vmatpush1.xpose.msra.mxu0 0.0
        %469 = vmatprep.subr.mxu0 0.0
        %470 = vmatpush1.xpose.msra.mxu0 0.0
        %471 = vmatprep.subr.mxu0 0.0
        %472 = vmatpush1.xpose.msra.mxu0 0.0
        %473 = vmatprep.subr.mxu0 0.0
        %474 = vmatpush1.xpose.msra.mxu0 0.0
        %475 = vmatprep.subr.mxu0 0.0
        %476 = vmatpush1.xpose.msra.mxu0 0.0
        %477 = vmatprep.subr.mxu0 0.0
        %478 = vmatpush1.xpose.msra.mxu0 0.0
        %479 = vmatprep.subr.mxu0 0.0
        %480 = vmatpush1.xpose.msra.mxu0 0.0
        %481 = vmatprep.subr.mxu0 0.0
        %482 = vmatpush1.xpose.msra.mxu0 0.0
        %483 = vmatprep.subr.mxu0 0.0
        %484 = vmatpush1.xpose.msra.mxu0 0.0
        %485 = vmatprep.mubr.f32.mxu0 %v390
        %486 = vmatmul.mubr.f32.gmra.mrb[0].mxu0 %v389
        %v487 = vpop.f32.mrb[0].mxu0
        %v488 = vadd.f32 0.0, %v487
        %v489 = vpop.f32.mrb[0].mxu0
        %490 = vmatprep.mubr.f32.mxu0 %v392
        %491 = vmatmul.mubr.f32.gmra.mrb[0].mxu0 %v391
        %v492 = vpop.f32.mrb[0].mxu0
        %v493 = vadd.f32 0.0, %v492
        %v494 = vpop.f32.mrb[0].mxu0
        %495 = vmatprep.mubr.f32.mxu0 %v394
        %496 = vmatmul.mubr.f32.gmra.mrb[0].mxu0 %v393
        %v497 = vpop.f32.mrb[0].mxu0
        %v498 = vadd.f32 0.0, %v497
        %v499 = vpop.f32.mrb[0].mxu0
        %500 = vmatprep.mubr.f32.mxu0 %v396
        %501 = vmatmul.mubr.f32.gmra.mrb[0].mxu0 %v395
        %v502 = vpop.f32.mrb[0].mxu0
        %v503 = vadd.f32 0.0, %v502
        %v504 = vpop.f32.mrb[0].mxu0
        %505 = vdwg.mxu0
        %506 = vmatprep.subr.mxu0 %v402
        %507 = vmatpush1.xpose.msra.mxu0 %v401
        %508 = vmatprep.subr.mxu0 %v404
        %509 = vmatpush1.xpose.msra.mxu0 %v403
        %510 = vmatprep.subr.mxu0 0.0
        %511 = vmatpush1.xpose.msra.mxu0 0.0
        %512 = vmatprep.subr.mxu0 0.0
        %513 = vmatpush1.xpose.msra.mxu0 0.0
        %514 = vmatprep.subr.mxu0 0.0
        %515 = vmatpush1.xpose.msra.mxu0 0.0
        %516 = vmatprep.subr.mxu0 0.0
        %517 = vmatpush1.xpose.msra.mxu0 0.0
        %518 = vmatprep.subr.mxu0 0.0
        %519 = vmatpush1.xpose.msra.mxu0 0.0
        %520 = vmatprep.subr.mxu0 0.0
        %521 = vmatpush1.xpose.msra.mxu0 0.0
        %522 = vmatprep.subr.mxu0 0.0
        %523 = vmatpush1.xpose.msra.mxu0 0.0
        %524 = vmatprep.subr.mxu0 0.0
        %525 = vmatpush1.xpose.msra.mxu0 0.0
        %526 = vmatprep.subr.mxu0 0.0
        %527 = vmatpush1.xpose.msra.mxu0 0.0
        %528 = vmatprep.subr.mxu0 0.0
        %529 = vmatpush1.xpose.msra.mxu0 0.0
        %530 = vmatprep.subr.mxu0 0.0
        %531 = vmatpush1.xpose.msra.mxu0 0.0
        %532 = vmatprep.subr.mxu0 0.0
        %533 = vmatpush1.xpose.msra.mxu0 0.0
        %534 = vmatprep.subr.mxu0 0.0
        %535 = vmatpush1.xpose.msra.mxu0 0.0
        %536 = vmatprep.subr.mxu0 0.0
        %537 = vmatpush1.xpose.msra.mxu0 0.0
        %538 = vmatprep.subr.mxu0 0.0
        %539 = vmatpush1.xpose.msra.mxu0 0.0
        %540 = vmatprep.subr.mxu0 0.0
        %541 = vmatpush1.xpose.msra.mxu0 0.0
        %542 = vmatprep.subr.mxu0 0.0
        %543 = vmatpush1.xpose.msra.mxu0 0.0
        %544 = vmatprep.subr.mxu0 0.0
        %545 = vmatpush1.xpose.msra.mxu0 0.0
        %546 = vmatprep.subr.mxu0 0.0
        %547 = vmatpush1.xpose.msra.mxu0 0.0
        %548 = vmatprep.subr.mxu0 0.0
        %549 = vmatpush1.xpose.msra.mxu0 0.0
        %550 = vmatprep.subr.mxu0 0.0
        %551 = vmatpush1.xpose.msra.mxu0 0.0
        %552 = vmatprep.subr.mxu0 0.0
        %553 = vmatpush1.xpose.msra.mxu0 0.0
        %554 = vmatprep.subr.mxu0 0.0
        %555 = vmatpush1.xpose.msra.mxu0 0.0
        %556 = vmatprep.subr.mxu0 0.0
        %557 = vmatpush1.xpose.msra.mxu0 0.0
        %558 = vmatprep.subr.mxu0 0.0
        %559 = vmatpush1.xpose.msra.mxu0 0.0
        %560 = vmatprep.subr.mxu0 0.0
        %561 = vmatpush1.xpose.msra.mxu0 0.0
        %562 = vmatprep.subr.mxu0 0.0
        %563 = vmatpush1.xpose.msra.mxu0 0.0
        %564 = vmatprep.subr.mxu0 0.0
        %565 = vmatpush1.xpose.msra.mxu0 0.0
        %566 = vmatprep.subr.mxu0 0.0
        %567 = vmatpush1.xpose.msra.mxu0 0.0
        %568 = vmatprep.subr.mxu0 0.0
        %569 = vmatpush1.xpose.msra.mxu0 0.0
        %570 = vmatprep.mubr.f32.mxu0 %v390
        %571 = vmatmul.mubr.f32.gmra.mrb[0].mxu0 %v389
        %v572 = vpop.f32.mrb[0].mxu0
        %v573 = vadd.f32 0.0, %v572
        %v574 = vpop.f32.mrb[0].mxu0
        %575 = vmatprep.mubr.f32.mxu0 %v392
        %576 = vmatmul.mubr.f32.gmra.mrb[0].mxu0 %v391
        %v577 = vpop.f32.mrb[0].mxu0
        %v578 = vadd.f32 0.0, %v577
        %v579 = vpop.f32.mrb[0].mxu0
        %580 = vmatprep.mubr.f32.mxu0 %v394
        %581 = vmatmul.mubr.f32.gmra.mrb[0].mxu0 %v393
        %v582 = vpop.f32.mrb[0].mxu0
        %v583 = vadd.f32 0.0, %v582
        %v584 = vpop.f32.mrb[0].mxu0
        %585 = vmatprep.mubr.f32.mxu0 %v396
        %586 = vmatmul.mubr.f32.gmra.mrb[0].mxu0 %v395
        %v587 = vpop.f32.mrb[0].mxu0
        %v588 = vadd.f32 0.0, %v587
        %v589 = vpop.f32.mrb[0].mxu0
        %590 = vdwg.mxu0
        %vm591 = vcmask 130048
        %v592 = vsel %vm591, %v488, 0.0
        %593 = vadd.xlane.f32.xlu0 %v592
        %v594 = vpop.xlane.xlu0 %593
        %v595 = vsel %vm591, %v493, 0.0
        %596 = vadd.xlane.f32.xlu0 %v595
        %v597 = vpop.xlane.xlu0 %596
        %v598 = vsel %vm591, %v498, 0.0
        %599 = vadd.xlane.f32.xlu0 %v598
        %v600 = vpop.xlane.xlu0 %599
        %v601 = vsel %vm591, %v503, 0.0
        %602 = vadd.xlane.f32.xlu0 %v601
        %v603 = vpop.xlane.xlu0 %602
        %v604 = vrcp.pop 16.0
        %v605 = vmul.f32 %v594, %v604
        %v606 = vmul.f32 %v597, %v604
        %v607 = vmul.f32 %v600, %v604
        %v608 = vmul.f32 %v603, %v604
        %vm609 = vcmask 15360
        %610 = vst.msk [vmem:[#allocation2] sm:$0xff] %vm609, 0.0
        %611 = vst.msk [vmem:[#allocation2 + $0x8] sm:$0xff] %vm609, 0.0
        %612 = vst.msk [vmem:[#allocation2 + $0x10] sm:$0xff] %vm609, 0.0
        %613 = vst.msk [vmem:[#allocation2 + $0x18] sm:$0xff] %vm609, 0.0
        %vm614 = vcmask 162960
        %615 = vst.msk [vmem:[#allocation2] sm:$0xff] %vm614, 0.0
        %616 = vst.msk [vmem:[#allocation2 + $0x8] sm:$0xff] %vm614, 0.0
        %617 = vst.msk [vmem:[#allocation2 + $0x10] sm:$0xff] %vm614, 0.0
        %618 = vst.msk [vmem:[#allocation2 + $0x18] sm:$0xff] %vm614, 0.0
        %623 = vrot.lane.b32.xlu0 %v488, 2
        %v624 = vpop.permute.xlu0 %623
        %625 = vrot.lane.b32.xlu0 %v493, 2
        %v626 = vpop.permute.xlu0 %625
        %627 = vrot.lane.b32.xlu0 %v498, 2
        %v628 = vpop.permute.xlu0 %627
        %629 = vrot.lane.b32.xlu0 %v503, 2
        %v630 = vpop.permute.xlu0 %629
        %vm635 = vcmask 146448
        %636 = vst.msk [vmem:[#allocation2] sm:$0xff] %vm635, %v624
        %637 = vst.msk [vmem:[#allocation2 + $0x8] sm:$0xff] %vm635, %v626
        %638 = vst.msk [vmem:[#allocation2 + $0x10] sm:$0xff] %vm635, %v628
        %639 = vst.msk [vmem:[#allocation2 + $0x18] sm:$0xff] %vm635, %v630
        %v640 = vld [vmem:[#allocation2] sm:$0xff]
        %v641 = vld [vmem:[#allocation2 + $0x8] sm:$0xff]
        %v642 = vld [vmem:[#allocation2 + $0x10] sm:$0xff]
        %v643 = vld [vmem:[#allocation2 + $0x18] sm:$0xff]
        %645 = vset.pattern.permute.xlu0 0
        %646 = vperm.xlu0 %645, %v409
        %v647 = vpop.permute.xlu0 %646
        %650 = vset.pattern.permute.xlu0 0
        %651 = vperm.xlu0 %650, %v410
        %v652 = vpop.permute.xlu0 %651
        %655 = vset.pattern.permute.xlu0 0
        %656 = vperm.xlu0 %655, %v411
        %v657 = vpop.permute.xlu0 %656
        %660 = vset.pattern.permute.xlu0 0
        %661 = vperm.xlu0 %660, %v412
        %v662 = vpop.permute.xlu0 %661
        %v664 = vmul.f32 %v647, %v640
        %v665 = vmul.f32 %v652, %v641
        %v666 = vmul.f32 %v657, %v642
        %v667 = vmul.f32 %v662, %v643
        %v668 = vadd.f32 %v664, 0.0
        %v669 = vadd.f32 %v665, 0.0
        %v670 = vadd.f32 %v666, 0.0
        %v671 = vadd.f32 %v667, 0.0
        %672 = vset.pattern.permute.xlu0 1
        %673 = vperm.xlu0 %672, %v409
        %v674 = vpop.permute.xlu0 %673
        %676 = vset.pattern.permute.xlu0 1
        %677 = vperm.xlu0 %676, %v410
        %v678 = vpop.permute.xlu0 %677
        %680 = vset.pattern.permute.xlu0 1
        %681 = vperm.xlu0 %680, %v411
        %v682 = vpop.permute.xlu0 %681
        %684 = vset.pattern.permute.xlu0 1
        %685 = vperm.xlu0 %684, %v412
        %v686 = vpop.permute.xlu0 %685
        %v688 = vmul.f32 %v674, %v640
        %v689 = vmul.f32 %v678, %v641
        %v690 = vmul.f32 %v682, %v642
        %v691 = vmul.f32 %v686, %v643
        %696 = vrot.lane.b32.xlu0 %v688, 126
        %v697 = vpop.permute.xlu0 %696
        %698 = vrot.lane.b32.xlu0 %v689, 126
        %v699 = vpop.permute.xlu0 %698
        %700 = vrot.lane.b32.xlu0 %v690, 126
        %v701 = vpop.permute.xlu0 %700
        %702 = vrot.lane.b32.xlu0 %v691, 126
        %v703 = vpop.permute.xlu0 %702
        %v708 = vadd.f32 %v668, %v697
        %v709 = vadd.f32 %v669, %v699
        %v710 = vadd.f32 %v670, %v701
        %v711 = vadd.f32 %v671, %v703
        %712 = vset.pattern.permute.xlu0 2
        %713 = vperm.xlu0 %712, %v409
        %v714 = vpop.permute.xlu0 %713
        %716 = vset.pattern.permute.xlu0 2
        %717 = vperm.xlu0 %716, %v410
        %v718 = vpop.permute.xlu0 %717
        %720 = vset.pattern.permute.xlu0 2
        %721 = vperm.xlu0 %720, %v411
        %v722 = vpop.permute.xlu0 %721
        %724 = vset.pattern.permute.xlu0 2
        %725 = vperm.xlu0 %724, %v412
        %v726 = vpop.permute.xlu0 %725
        %v728 = vmul.f32 %v714, %v640
        %v729 = vmul.f32 %v718, %v641
        %v730 = vmul.f32 %v722, %v642
        %v731 = vmul.f32 %v726, %v643
        %736 = vrot.lane.b32.xlu0 %v728, 124
        %v737 = vpop.permute.xlu0 %736
        %738 = vrot.lane.b32.xlu0 %v729, 124
        %v739 = vpop.permute.xlu0 %738
        %740 = vrot.lane.b32.xlu0 %v730, 124
        %v741 = vpop.permute.xlu0 %740
        %742 = vrot.lane.b32.xlu0 %v731, 124
        %v743 = vpop.permute.xlu0 %742
        %v748 = vadd.f32 %v708, %v737
        %v749 = vadd.f32 %v709, %v739
        %v750 = vadd.f32 %v710, %v741
        %v751 = vadd.f32 %v711, %v743
        %vm752 = vcmask 261120
        %v754 = vsel %vm752, %v405, 0
        %v757 = vsel %vm752, %v406, 0
        %v760 = vsel %vm752, %v407, 0
        %v763 = vsel %vm752, %v408, 0
        %765 = vmatprep.subr.mxu0 0.0
        %766 = vmatpush1.msra.mxu0 %v748
        %767 = vmatprep.subr.mxu0 0.0
        %768 = vmatpush1.msra.mxu0 %v749
        %769 = vmatprep.subr.mxu0 0.0
        %770 = vmatpush1.msra.mxu0 %v750
        %771 = vmatprep.subr.mxu0 0.0
        %772 = vmatpush1.msra.mxu0 %v751
        %773 = vmatprep.subr.mxu0 0.0
        %774 = vmatpush1.msra.mxu0 0.0
        %775 = vmatprep.subr.mxu0 0.0
        %776 = vmatpush1.msra.mxu0 0.0
        %777 = vmatprep.subr.mxu0 0.0
        %778 = vmatpush1.msra.mxu0 0.0
        %779 = vmatprep.subr.mxu0 0.0
        %780 = vmatpush1.msra.mxu0 0.0
        %781 = vmatprep.subr.mxu0 0.0
        %782 = vmatpush1.msra.mxu0 0.0
        %783 = vmatprep.subr.mxu0 0.0
        %784 = vmatpush1.msra.mxu0 0.0
        %785 = vmatprep.subr.mxu0 0.0
        %786 = vmatpush1.msra.mxu0 0.0
        %787 = vmatprep.subr.mxu0 0.0
        %788 = vmatpush1.msra.mxu0 0.0
        %789 = vmatprep.subr.mxu0 0.0
        %790 = vmatpush1.msra.mxu0 0.0
        %791 = vmatprep.subr.mxu0 0.0
        %792 = vmatpush1.msra.mxu0 0.0
        %793 = vmatprep.subr.mxu0 0.0
        %794 = vmatpush1.msra.mxu0 0.0
        %795 = vmatprep.subr.mxu0 0.0
        %796 = vmatpush1.msra.mxu0 0.0
        %797 = vmatprep.subr.mxu0 0.0
        %798 = vmatpush1.msra.mxu0 0.0
        %799 = vmatprep.subr.mxu0 0.0
        %800 = vmatpush1.msra.mxu0 0.0
        %801 = vmatprep.subr.mxu0 0.0
        %802 = vmatpush1.msra.mxu0 0.0
        %803 = vmatprep.subr.mxu0 0.0
        %804 = vmatpush1.msra.mxu0 0.0
        %805 = vmatprep.subr.mxu0 0.0
        %806 = vmatpush1.msra.mxu0 0.0
        %807 = vmatprep.subr.mxu0 0.0
        %808 = vmatpush1.msra.mxu0 0.0
        %809 = vmatprep.subr.mxu0 0.0
        %810 = vmatpush1.msra.mxu0 0.0
        %811 = vmatprep.subr.mxu0 0.0
        %812 = vmatpush1.msra.mxu0 0.0
        %813 = vmatprep.subr.mxu0 0.0
        %814 = vmatpush1.msra.mxu0 0.0
        %815 = vmatprep.subr.mxu0 0.0
        %816 = vmatpush1.msra.mxu0 0.0
        %817 = vmatprep.subr.mxu0 0.0
        %818 = vmatpush1.msra.mxu0 0.0
        %819 = vmatprep.subr.mxu0 0.0
        %820 = vmatpush1.msra.mxu0 0.0
        %821 = vmatprep.subr.mxu0 0.0
        %822 = vmatpush1.msra.mxu0 0.0
        %823 = vmatprep.subr.mxu0 0.0
        %824 = vmatpush1.msra.mxu0 0.0
        %825 = vmatprep.subr.mxu0 0.0
        %826 = vmatpush1.msra.mxu0 0.0
        %827 = vmatprep.subr.mxu0 0.0
        %828 = vmatpush1.msra.mxu0 0.0
        %829 = vmatprep.mubr.f32.mxu0 0.0
        %830 = vmatmul.mubr.f32.gmra.mrb[0].mxu0 %v754
        %v831 = vpop.f32.mrb[0].mxu0
        %v832 = vadd.f32 0.0, %v831
        %v833 = vpop.f32.mrb[0].mxu0
        %834 = vmatprep.mubr.f32.mxu0 0.0
        %835 = vmatmul.mubr.f32.gmra.mrb[0].mxu0 %v757
        %v836 = vpop.f32.mrb[0].mxu0
        %v837 = vadd.f32 0.0, %v836
        %v838 = vpop.f32.mrb[0].mxu0
        %839 = vmatprep.mubr.f32.mxu0 0.0
        %840 = vmatmul.mubr.f32.gmra.mrb[0].mxu0 %v760
        %v841 = vpop.f32.mrb[0].mxu0
        %v842 = vadd.f32 0.0, %v841
        %v843 = vpop.f32.mrb[0].mxu0
        %844 = vmatprep.mubr.f32.mxu0 0.0
        %845 = vmatmul.mubr.f32.gmra.mrb[0].mxu0 %v763
        %v846 = vpop.f32.mrb[0].mxu0
        %v847 = vadd.f32 0.0, %v846
        %v848 = vpop.f32.mrb[0].mxu0
        %849 = vdwg.mxu0
        %v850 = vsel %vm591, %v832, 0.0
        %851 = vadd.xlane.f32.xlu0 %v850
        %v852 = vpop.xlane.xlu0 %851
        %v853 = vsel %vm591, %v837, 0.0
        %854 = vadd.xlane.f32.xlu0 %v853
        %v855 = vpop.xlane.xlu0 %854
        %v856 = vsel %vm591, %v842, 0.0
        %857 = vadd.xlane.f32.xlu0 %v856
        %v858 = vpop.xlane.xlu0 %857
        %v859 = vsel %vm591, %v847, 0.0
        %860 = vadd.xlane.f32.xlu0 %v859
        %v861 = vpop.xlane.xlu0 %860
        %v862 = vmul.f32 %v852, 0.00390625
        %v863 = vmul.f32 %v855, 0.00390625
        %v864 = vmul.f32 %v858, 0.00390625
        %v865 = vmul.f32 %v861, 0.00390625
        %v866 = vsub.f32 %v748, %v862
        %v867 = vsub.f32 %v749, %v863
        %v868 = vsub.f32 %v750, %v864
        %v869 = vsub.f32 %v751, %v865
        %v870 = vmul.f32 %v866, %v866
        %v871 = vmul.f32 %v867, %v867
        %v872 = vmul.f32 %v868, %v868
        %v873 = vmul.f32 %v869, %v869
        %874 = vmatprep.subr.mxu0 0.0
        %875 = vmatpush1.msra.mxu0 %v870
        %876 = vmatprep.subr.mxu0 0.0
        %877 = vmatpush1.msra.mxu0 %v871
        %878 = vmatprep.subr.mxu0 0.0
        %879 = vmatpush1.msra.mxu0 %v872
        %880 = vmatprep.subr.mxu0 0.0
        %881 = vmatpush1.msra.mxu0 %v873
        %882 = vmatprep.subr.mxu0 0.0
        %883 = vmatpush1.msra.mxu0 0.0
        %884 = vmatprep.subr.mxu0 0.0
        %885 = vmatpush1.msra.mxu0 0.0
        %886 = vmatprep.subr.mxu0 0.0
        %887 = vmatpush1.msra.mxu0 0.0
        %888 = vmatprep.subr.mxu0 0.0
        %889 = vmatpush1.msra.mxu0 0.0
        %890 = vmatprep.subr.mxu0 0.0
        %891 = vmatpush1.msra.mxu0 0.0
        %892 = vmatprep.subr.mxu0 0.0
        %893 = vmatpush1.msra.mxu0 0.0
        %894 = vmatprep.subr.mxu0 0.0
        %895 = vmatpush1.msra.mxu0 0.0
        %896 = vmatprep.subr.mxu0 0.0
        %897 = vmatpush1.msra.mxu0 0.0
        %898 = vmatprep.subr.mxu0 0.0
        %899 = vmatpush1.msra.mxu0 0.0
        %900 = vmatprep.subr.mxu0 0.0
        %901 = vmatpush1.msra.mxu0 0.0
        %902 = vmatprep.subr.mxu0 0.0
        %903 = vmatpush1.msra.mxu0 0.0
        %904 = vmatprep.subr.mxu0 0.0
        %905 = vmatpush1.msra.mxu0 0.0
        %906 = vmatprep.subr.mxu0 0.0
        %907 = vmatpush1.msra.mxu0 0.0
        %908 = vmatprep.subr.mxu0 0.0
        %909 = vmatpush1.msra.mxu0 0.0
        %910 = vmatprep.subr.mxu0 0.0
        %911 = vmatpush1.msra.mxu0 0.0
        %912 = vmatprep.subr.mxu0 0.0
        %913 = vmatpush1.msra.mxu0 0.0
        %914 = vmatprep.subr.mxu0 0.0
        %915 = vmatpush1.msra.mxu0 0.0
        %916 = vmatprep.subr.mxu0 0.0
        %917 = vmatpush1.msra.mxu0 0.0
        %918 = vmatprep.subr.mxu0 0.0
        %919 = vmatpush1.msra.mxu0 0.0
        %920 = vmatprep.subr.mxu0 0.0
        %921 = vmatpush1.msra.mxu0 0.0
        %922 = vmatprep.subr.mxu0 0.0
        %923 = vmatpush1.msra.mxu0 0.0
        %924 = vmatprep.subr.mxu0 0.0
        %925 = vmatpush1.msra.mxu0 0.0
        %926 = vmatprep.subr.mxu0 0.0
        %927 = vmatpush1.msra.mxu0 0.0
        %928 = vmatprep.subr.mxu0 0.0
        %929 = vmatpush1.msra.mxu0 0.0
        %930 = vmatprep.subr.mxu0 0.0
        %931 = vmatpush1.msra.mxu0 0.0
        %932 = vmatprep.subr.mxu0 0.0
        %933 = vmatpush1.msra.mxu0 0.0
        %934 = vmatprep.subr.mxu0 0.0
        %935 = vmatpush1.msra.mxu0 0.0
        %936 = vmatprep.subr.mxu0 0.0
        %937 = vmatpush1.msra.mxu0 0.0
        %938 = vmatprep.mubr.f32.mxu0 0.0
        %939 = vmatmul.mubr.f32.gmra.mrb[0].mxu0 %v754
        %v940 = vpop.f32.mrb[0].mxu0
        %v941 = vadd.f32 0.0, %v940
        %v942 = vpop.f32.mrb[0].mxu0
        %943 = vmatprep.mubr.f32.mxu0 0.0
        %944 = vmatmul.mubr.f32.gmra.mrb[0].mxu0 %v757
        %v945 = vpop.f32.mrb[0].mxu0
        %v946 = vadd.f32 0.0, %v945
        %v947 = vpop.f32.mrb[0].mxu0
        %948 = vmatprep.mubr.f32.mxu0 0.0
        %949 = vmatmul.mubr.f32.gmra.mrb[0].mxu0 %v760
        %v950 = vpop.f32.mrb[0].mxu0
        %v951 = vadd.f32 0.0, %v950
        %v952 = vpop.f32.mrb[0].mxu0
        %953 = vmatprep.mubr.f32.mxu0 0.0
        %954 = vmatmul.mubr.f32.gmra.mrb[0].mxu0 %v763
        %v955 = vpop.f32.mrb[0].mxu0
        %v956 = vadd.f32 0.0, %v955
        %v957 = vpop.f32.mrb[0].mxu0
        %958 = vdwg.mxu0
        %v959 = vsel %vm591, %v941, 0.0
        %960 = vadd.xlane.f32.xlu0 %v959
        %v961 = vpop.xlane.xlu0 %960
        %v962 = vsel %vm591, %v946, 0.0
        %963 = vadd.xlane.f32.xlu0 %v962
        %v964 = vpop.xlane.xlu0 %963
        %v965 = vsel %vm591, %v951, 0.0
        %966 = vadd.xlane.f32.xlu0 %v965
        %v967 = vpop.xlane.xlu0 %966
        %v968 = vsel %vm591, %v956, 0.0
        %969 = vadd.xlane.f32.xlu0 %v968
        %v970 = vpop.xlane.xlu0 %969
        %v971 = vmul.f32 %v961, 0.00390625
        %v972 = vmul.f32 %v964, 0.00390625
        %v973 = vmul.f32 %v967, 0.00390625
        %v974 = vmul.f32 %v970, 0.00390625
        %v975 = vadd.f32 %v971, 1e-05
        %v976 = vadd.f32 %v972, 1e-05
        %v977 = vadd.f32 %v973, 1e-05
        %v978 = vadd.f32 %v974, 1e-05
        %v979 = vrsqrt.pop %v975
        %v980 = vrsqrt.pop %v976
        %v981 = vrsqrt.pop %v977
        %v982 = vrsqrt.pop %v978
        %v983 = vmul.f32 %v866, %v979
        %v984 = vmul.f32 %v867, %v980
        %v985 = vmul.f32 %v868, %v981
        %v986 = vmul.f32 %v869, %v982
        %988 = vset.pattern.permute.xlu0 0
        %989 = vperm.xlu0 %988, %v413
        %v990 = vpop.permute.xlu0 %989
        %993 = vset.pattern.permute.xlu0 0
        %994 = vperm.xlu0 %993, %v414
        %v995 = vpop.permute.xlu0 %994
        %998 = vset.pattern.permute.xlu0 0
        %999 = vperm.xlu0 %998, %v415
        %v1000 = vpop.permute.xlu0 %999
        %1003 = vset.pattern.permute.xlu0 0
        %1004 = vperm.xlu0 %1003, %v416
        %v1005 = vpop.permute.xlu0 %1004
        %v1007 = vmul.f32 %v983, %v990
        %v1008 = vmul.f32 %v984, %v995
        %v1009 = vmul.f32 %v985, %v1000
        %v1010 = vmul.f32 %v986, %v1005
        %1012 = vset.pattern.permute.xlu0 0
        %1013 = vperm.xlu0 %1012, %v417
        %v1014 = vpop.permute.xlu0 %1013
        %1017 = vset.pattern.permute.xlu0 0
        %1018 = vperm.xlu0 %1017, %v418
        %v1019 = vpop.permute.xlu0 %1018
        %1022 = vset.pattern.permute.xlu0 0
        %1023 = vperm.xlu0 %1022, %v419
        %v1024 = vpop.permute.xlu0 %1023
        %1027 = vset.pattern.permute.xlu0 0
        %1028 = vperm.xlu0 %1027, %v420
        %v1029 = vpop.permute.xlu0 %1028
        %v1031 = vadd.f32 %v1007, %v1014
        %v1032 = vadd.f32 %v1008, %v1019
        %v1033 = vadd.f32 %v1009, %v1024
        %v1034 = vadd.f32 %v1010, %v1029
        %v1035 = vxor.u32 %v1031, 2147483648
        %v1036 = vxor.u32 %v1032, 2147483648
        %v1037 = vxor.u32 %v1033, 2147483648
        %v1038 = vxor.u32 %v1034, 2147483648
        %v1039 = vmul.f32 %v1035, 1.442695
        %v1040 = vpow.pop %v1039
        %v1041 = vmul.f32 %v1036, 1.442695
        %v1042 = vpow.pop %v1041
        %v1043 = vmul.f32 %v1037, 1.442695
        %v1044 = vpow.pop %v1043
        %v1045 = vmul.f32 %v1038, 1.442695
        %v1046 = vpow.pop %v1045
        %v1047 = vadd.f32 %v1040, 1.0
        %v1048 = vadd.f32 %v1042, 1.0
        %v1049 = vadd.f32 %v1044, 1.0
        %v1050 = vadd.f32 %v1046, 1.0
        %v1051 = vrcp.pop %v1047
        %v1052 = vmul.f32 1.0, %v1051
        %v1053 = vrcp.pop %v1048
        %v1054 = vmul.f32 1.0, %v1053
        %v1055 = vrcp.pop %v1049
        %v1056 = vmul.f32 1.0, %v1055
        %v1057 = vrcp.pop %v1050
        %v1058 = vmul.f32 1.0, %v1057
        %1059 = vst.msk [vmem:[#allocation3] sm:$0xff] %vm609, 0.0
        %1060 = vst.msk [vmem:[#allocation3 + $0x8] sm:$0xff] %vm609, 0.0
        %1061 = vst.msk [vmem:[#allocation3 + $0x10] sm:$0xff] %vm609, 0.0
        %1062 = vst.msk [vmem:[#allocation3 + $0x18] sm:$0xff] %vm609, 0.0
        %1063 = vst.msk [vmem:[#allocation3] sm:$0xff] %vm614, 0.0
        %1064 = vst.msk [vmem:[#allocation3 + $0x8] sm:$0xff] %vm614, 0.0
        %1065 = vst.msk [vmem:[#allocation3 + $0x10] sm:$0xff] %vm614, 0.0
        %1066 = vst.msk [vmem:[#allocation3 + $0x18] sm:$0xff] %vm614, 0.0
        %1071 = vrot.lane.b32.xlu0 %v573, 2
        %v1072 = vpop.permute.xlu0 %1071
        %1073 = vrot.lane.b32.xlu0 %v578, 2
        %v1074 = vpop.permute.xlu0 %1073
        %1075 = vrot.lane.b32.xlu0 %v583, 2
        %v1076 = vpop.permute.xlu0 %1075
        %1077 = vrot.lane.b32.xlu0 %v588, 2
        %v1078 = vpop.permute.xlu0 %1077
        %1083 = vst.msk [vmem:[#allocation3] sm:$0xff] %vm635, %v1072
        %1084 = vst.msk [vmem:[#allocation3 + $0x8] sm:$0xff] %vm635, %v1074
        %1085 = vst.msk [vmem:[#allocation3 + $0x10] sm:$0xff] %vm635, %v1076
        %1086 = vst.msk [vmem:[#allocation3 + $0x18] sm:$0xff] %vm635, %v1078
        %v1087 = vld [vmem:[#allocation3] sm:$0xff]
        %v1088 = vld [vmem:[#allocation3 + $0x8] sm:$0xff]
        %v1089 = vld [vmem:[#allocation3 + $0x10] sm:$0xff]
        %v1090 = vld [vmem:[#allocation3 + $0x18] sm:$0xff]
        %v1091 = vmul.f32 %v647, %v1087
        %v1092 = vmul.f32 %v652, %v1088
        %v1093 = vmul.f32 %v657, %v1089
        %v1094 = vmul.f32 %v662, %v1090
        %v1095 = vadd.f32 %v1091, 0.0
        %v1096 = vadd.f32 %v1092, 0.0
        %v1097 = vadd.f32 %v1093, 0.0
        %v1098 = vadd.f32 %v1094, 0.0
        %v1099 = vmul.f32 %v674, %v1087
        %v1100 = vmul.f32 %v678, %v1088
        %v1101 = vmul.f32 %v682, %v1089
        %v1102 = vmul.f32 %v686, %v1090
        %1107 = vrot.lane.b32.xlu0 %v1099, 126
        %v1108 = vpop.permute.xlu0 %1107
        %1109 = vrot.lane.b32.xlu0 %v1100, 126
        %v1110 = vpop.permute.xlu0 %1109
        %1111 = vrot.lane.b32.xlu0 %v1101, 126
        %v1112 = vpop.permute.xlu0 %1111
        %1113 = vrot.lane.b32.xlu0 %v1102, 126
        %v1114 = vpop.permute.xlu0 %1113
        %v1119 = vadd.f32 %v1095, %v1108
        %v1120 = vadd.f32 %v1096, %v1110
        %v1121 = vadd.f32 %v1097, %v1112
        %v1122 = vadd.f32 %v1098, %v1114
        %v1123 = vmul.f32 %v714, %v1087
        %v1124 = vmul.f32 %v718, %v1088
        %v1125 = vmul.f32 %v722, %v1089
        %v1126 = vmul.f32 %v726, %v1090
        %1131 = vrot.lane.b32.xlu0 %v1123, 124
        %v1132 = vpop.permute.xlu0 %1131
        %1133 = vrot.lane.b32.xlu0 %v1124, 124
        %v1134 = vpop.permute.xlu0 %1133
        %1135 = vrot.lane.b32.xlu0 %v1125, 124
        %v1136 = vpop.permute.xlu0 %1135
        %1137 = vrot.lane.b32.xlu0 %v1126, 124
        %v1138 = vpop.permute.xlu0 %1137
        %v1143 = vadd.f32 %v1119, %v1132
        %v1144 = vadd.f32 %v1120, %v1134
        %v1145 = vadd.f32 %v1121, %v1136
        %v1146 = vadd.f32 %v1122, %v1138
        %1147 = vmatprep.subr.mxu0 0.0
        %1148 = vmatpush1.msra.mxu0 %v1143
        %1149 = vmatprep.subr.mxu0 0.0
        %1150 = vmatpush1.msra.mxu0 %v1144
        %1151 = vmatprep.subr.mxu0 0.0
        %1152 = vmatpush1.msra.mxu0 %v1145
        %1153 = vmatprep.subr.mxu0 0.0
        %1154 = vmatpush1.msra.mxu0 %v1146
        %1155 = vmatprep.subr.mxu0 0.0
        %1156 = vmatpush1.msra.mxu0 0.0
        %1157 = vmatprep.subr.mxu0 0.0
        %1158 = vmatpush1.msra.mxu0 0.0
        %1159 = vmatprep.subr.mxu0 0.0
        %1160 = vmatpush1.msra.mxu0 0.0
        %1161 = vmatprep.subr.mxu0 0.0
        %1162 = vmatpush1.msra.mxu0 0.0
        %1163 = vmatprep.subr.mxu0 0.0
        %1164 = vmatpush1.msra.mxu0 0.0
        %1165 = vmatprep.subr.mxu0 0.0
        %1166 = vmatpush1.msra.mxu0 0.0
        %1167 = vmatprep.subr.mxu0 0.0
        %1168 = vmatpush1.msra.mxu0 0.0
        %1169 = vmatprep.subr.mxu0 0.0
        %1170 = vmatpush1.msra.mxu0 0.0
        %1171 = vmatprep.subr.mxu0 0.0
        %1172 = vmatpush1.msra.mxu0 0.0
        %1173 = vmatprep.subr.mxu0 0.0
        %1174 = vmatpush1.msra.mxu0 0.0
        %1175 = vmatprep.subr.mxu0 0.0
        %1176 = vmatpush1.msra.mxu0 0.0
        %1177 = vmatprep.subr.mxu0 0.0
        %1178 = vmatpush1.msra.mxu0 0.0
        %1179 = vmatprep.subr.mxu0 0.0
        %1180 = vmatpush1.msra.mxu0 0.0
        %1181 = vmatprep.subr.mxu0 0.0
        %1182 = vmatpush1.msra.mxu0 0.0
        %1183 = vmatprep.subr.mxu0 0.0
        %1184 = vmatpush1.msra.mxu0 0.0
        %1185 = vmatprep.subr.mxu0 0.0
        %1186 = vmatpush1.msra.mxu0 0.0
        %1187 = vmatprep.subr.mxu0 0.0
        %1188 = vmatpush1.msra.mxu0 0.0
        %1189 = vmatprep.subr.mxu0 0.0
        %1190 = vmatpush1.msra.mxu0 0.0
        %1191 = vmatprep.subr.mxu0 0.0
        %1192 = vmatpush1.msra.mxu0 0.0
        %1193 = vmatprep.subr.mxu0 0.0
        %1194 = vmatpush1.msra.mxu0 0.0
        %1195 = vmatprep.subr.mxu0 0.0
        %1196 = vmatpush1.msra.mxu0 0.0
        %1197 = vmatprep.subr.mxu0 0.0
        %1198 = vmatpush1.msra.mxu0 0.0
        %1199 = vmatprep.subr.mxu0 0.0
        %1200 = vmatpush1.msra.mxu0 0.0
        %1201 = vmatprep.subr.mxu0 0.0
        %1202 = vmatpush1.msra.mxu0 0.0
        %1203 = vmatprep.subr.mxu0 0.0
        %1204 = vmatpush1.msra.mxu0 0.0
        %1205 = vmatprep.subr.mxu0 0.0
        %1206 = vmatpush1.msra.mxu0 0.0
        %1207 = vmatprep.subr.mxu0 0.0
        %1208 = vmatpush1.msra.mxu0 0.0
        %1209 = vmatprep.subr.mxu0 0.0
        %1210 = vmatpush1.msra.mxu0 0.0
        %1211 = vmatprep.mubr.f32.mxu0 0.0
        %1212 = vmatmul.mubr.f32.gmra.mrb[0].mxu0 %v754
        %v1213 = vpop.f32.mrb[0].mxu0
        %v1214 = vadd.f32 0.0, %v1213
        %v1215 = vpop.f32.mrb[0].mxu0
        %1216 = vmatprep.mubr.f32.mxu0 0.0
        %1217 = vmatmul.mubr.f32.gmra.mrb[0].mxu0 %v757
        %v1218 = vpop.f32.mrb[0].mxu0
        %v1219 = vadd.f32 0.0, %v1218
        %v1220 = vpop.f32.mrb[0].mxu0
        %1221 = vmatprep.mubr.f32.mxu0 0.0
        %1222 = vmatmul.mubr.f32.gmra.mrb[0].mxu0 %v760
        %v1223 = vpop.f32.mrb[0].mxu0
        %v1224 = vadd.f32 0.0, %v1223
        %v1225 = vpop.f32.mrb[0].mxu0
        %1226 = vmatprep.mubr.f32.mxu0 0.0
        %1227 = vmatmul.mubr.f32.gmra.mrb[0].mxu0 %v763
        %v1228 = vpop.f32.mrb[0].mxu0
        %v1229 = vadd.f32 0.0, %v1228
        %v1230 = vpop.f32.mrb[0].mxu0
        %1231 = vdwg.mxu0
        %v1232 = vsel %vm591, %v1214, 0.0
        %1233 = vadd.xlane.f32.xlu0 %v1232
        %v1234 = vpop.xlane.xlu0 %1233
        %v1235 = vsel %vm591, %v1219, 0.0
        %1236 = vadd.xlane.f32.xlu0 %v1235
        %v1237 = vpop.xlane.xlu0 %1236
        %v1238 = vsel %vm591, %v1224, 0.0
        %1239 = vadd.xlane.f32.xlu0 %v1238
        %v1240 = vpop.xlane.xlu0 %1239
        %v1241 = vsel %vm591, %v1229, 0.0
        %1242 = vadd.xlane.f32.xlu0 %v1241
        %v1243 = vpop.xlane.xlu0 %1242
        %v1244 = vmul.f32 %v1234, 0.00390625
        %v1245 = vmul.f32 %v1237, 0.00390625
        %v1246 = vmul.f32 %v1240, 0.00390625
        %v1247 = vmul.f32 %v1243, 0.00390625
        %v1248 = vsub.f32 %v1143, %v1244
        %v1249 = vsub.f32 %v1144, %v1245
        %v1250 = vsub.f32 %v1145, %v1246
        %v1251 = vsub.f32 %v1146, %v1247
        %v1252 = vmul.f32 %v1248, %v1248
        %v1253 = vmul.f32 %v1249, %v1249
        %v1254 = vmul.f32 %v1250, %v1250
        %v1255 = vmul.f32 %v1251, %v1251
        %1256 = vmatprep.subr.mxu0 0.0
        %1257 = vmatpush1.msra.mxu0 %v1252
        %1258 = vmatprep.subr.mxu0 0.0
        %1259 = vmatpush1.msra.mxu0 %v1253
        %1260 = vmatprep.subr.mxu0 0.0
        %1261 = vmatpush1.msra.mxu0 %v1254
        %1262 = vmatprep.subr.mxu0 0.0
        %1263 = vmatpush1.msra.mxu0 %v1255
        %1264 = vmatprep.subr.mxu0 0.0
        %1265 = vmatpush1.msra.mxu0 0.0
        %1266 = vmatprep.subr.mxu0 0.0
        %1267 = vmatpush1.msra.mxu0 0.0
        %1268 = vmatprep.subr.mxu0 0.0
        %1269 = vmatpush1.msra.mxu0 0.0
        %1270 = vmatprep.subr.mxu0 0.0
        %1271 = vmatpush1.msra.mxu0 0.0
        %1272 = vmatprep.subr.mxu0 0.0
        %1273 = vmatpush1.msra.mxu0 0.0
        %1274 = vmatprep.subr.mxu0 0.0
        %1275 = vmatpush1.msra.mxu0 0.0
        %1276 = vmatprep.subr.mxu0 0.0
        %1277 = vmatpush1.msra.mxu0 0.0
        %1278 = vmatprep.subr.mxu0 0.0
        %1279 = vmatpush1.msra.mxu0 0.0
        %1280 = vmatprep.subr.mxu0 0.0
        %1281 = vmatpush1.msra.mxu0 0.0
        %1282 = vmatprep.subr.mxu0 0.0
        %1283 = vmatpush1.msra.mxu0 0.0
        %1284 = vmatprep.subr.mxu0 0.0
        %1285 = vmatpush1.msra.mxu0 0.0
        %1286 = vmatprep.subr.mxu0 0.0
        %1287 = vmatpush1.msra.mxu0 0.0
        %1288 = vmatprep.subr.mxu0 0.0
        %1289 = vmatpush1.msra.mxu0 0.0
        %1290 = vmatprep.subr.mxu0 0.0
        %1291 = vmatpush1.msra.mxu0 0.0
        %1292 = vmatprep.subr.mxu0 0.0
        %1293 = vmatpush1.msra.mxu0 0.0
        %1294 = vmatprep.subr.mxu0 0.0
        %1295 = vmatpush1.msra.mxu0 0.0
        %1296 = vmatprep.subr.mxu0 0.0
        %1297 = vmatpush1.msra.mxu0 0.0
        %1298 = vmatprep.subr.mxu0 0.0
        %1299 = vmatpush1.msra.mxu0 0.0
        %1300 = vmatprep.subr.mxu0 0.0
        %1301 = vmatpush1.msra.mxu0 0.0
        %1302 = vmatprep.subr.mxu0 0.0
        %1303 = vmatpush1.msra.mxu0 0.0
        %1304 = vmatprep.subr.mxu0 0.0
        %1305 = vmatpush1.msra.mxu0 0.0
        %1306 = vmatprep.subr.mxu0 0.0
        %1307 = vmatpush1.msra.mxu0 0.0
        %1308 = vmatprep.subr.mxu0 0.0
        %1309 = vmatpush1.msra.mxu0 0.0
        %1310 = vmatprep.subr.mxu0 0.0
        %1311 = vmatpush1.msra.mxu0 0.0
        %1312 = vmatprep.subr.mxu0 0.0
        %1313 = vmatpush1.msra.mxu0 0.0
        %1314 = vmatprep.subr.mxu0 0.0
        %1315 = vmatpush1.msra.mxu0 0.0
        %1316 = vmatprep.subr.mxu0 0.0
        %1317 = vmatpush1.msra.mxu0 0.0
        %1318 = vmatprep.subr.mxu0 0.0
        %1319 = vmatpush1.msra.mxu0 0.0
        %1320 = vmatprep.mubr.f32.mxu0 0.0
        %1321 = vmatmul.mubr.f32.gmra.mrb[0].mxu0 %v754
        %v1322 = vpop.f32.mrb[0].mxu0
        %v1323 = vadd.f32 0.0, %v1322
        %v1324 = vpop.f32.mrb[0].mxu0
        %1325 = vmatprep.mubr.f32.mxu0 0.0
        %1326 = vmatmul.mubr.f32.gmra.mrb[0].mxu0 %v757
        %v1327 = vpop.f32.mrb[0].mxu0
        %v1328 = vadd.f32 0.0, %v1327
        %v1329 = vpop.f32.mrb[0].mxu0
        %1330 = vmatprep.mubr.f32.mxu0 0.0
        %1331 = vmatmul.mubr.f32.gmra.mrb[0].mxu0 %v760
        %v1332 = vpop.f32.mrb[0].mxu0
        %v1333 = vadd.f32 0.0, %v1332
        %v1334 = vpop.f32.mrb[0].mxu0
        %1335 = vmatprep.mubr.f32.mxu0 0.0
        %1336 = vmatmul.mubr.f32.gmra.mrb[0].mxu0 %v763
        %v1337 = vpop.f32.mrb[0].mxu0
        %v1338 = vadd.f32 0.0, %v1337
        %v1339 = vpop.f32.mrb[0].mxu0
        %1340 = vdwg.mxu0
        %v1341 = vsel %vm591, %v1323, 0.0
        %1342 = vadd.xlane.f32.xlu0 %v1341
        %v1343 = vpop.xlane.xlu0 %1342
        %v1344 = vsel %vm591, %v1328, 0.0
        %1345 = vadd.xlane.f32.xlu0 %v1344
        %v1346 = vpop.xlane.xlu0 %1345
        %v1347 = vsel %vm591, %v1333, 0.0
        %1348 = vadd.xlane.f32.xlu0 %v1347
        %v1349 = vpop.xlane.xlu0 %1348
        %v1350 = vsel %vm591, %v1338, 0.0
        %1351 = vadd.xlane.f32.xlu0 %v1350
        %v1352 = vpop.xlane.xlu0 %1351
        %v1353 = vmul.f32 %v1343, 0.00390625
        %v1354 = vmul.f32 %v1346, 0.00390625
        %v1355 = vmul.f32 %v1349, 0.00390625
        %v1356 = vmul.f32 %v1352, 0.00390625
        %v1357 = vadd.f32 %v1353, 1e-05
        %v1358 = vadd.f32 %v1354, 1e-05
        %v1359 = vadd.f32 %v1355, 1e-05
        %v1360 = vadd.f32 %v1356, 1e-05
        %v1361 = vrsqrt.pop %v1357
        %v1362 = vrsqrt.pop %v1358
        %v1363 = vrsqrt.pop %v1359
        %v1364 = vrsqrt.pop %v1360
        %v1365 = vmul.f32 %v1248, %v1361
        %v1366 = vmul.f32 %v1249, %v1362
        %v1367 = vmul.f32 %v1250, %v1363
        %v1368 = vmul.f32 %v1251, %v1364
        %v1369 = vmul.f32 %v1365, %v990
        %v1370 = vmul.f32 %v1366, %v995
        %v1371 = vmul.f32 %v1367, %v1000
        %v1372 = vmul.f32 %v1368, %v1005
        %v1373 = vadd.f32 %v1369, %v1014
        %v1374 = vadd.f32 %v1370, %v1019
        %v1375 = vadd.f32 %v1371, %v1024
        %v1376 = vadd.f32 %v1372, %v1029
        %v1377 = vxor.u32 %v1373, 2147483648
        %v1378 = vxor.u32 %v1374, 2147483648
        %v1379 = vxor.u32 %v1375, 2147483648
        %v1380 = vxor.u32 %v1376, 2147483648
        %v1381 = vmul.f32 %v1377, 1.442695
        %v1382 = vpow.pop %v1381
        %v1383 = vmul.f32 %v1378, 1.442695
        %v1384 = vpow.pop %v1383
        %v1385 = vmul.f32 %v1379, 1.442695
        %v1386 = vpow.pop %v1385
        %v1387 = vmul.f32 %v1380, 1.442695
        %v1388 = vpow.pop %v1387
        %v1389 = vadd.f32 %v1382, 1.0
        %v1390 = vadd.f32 %v1384, 1.0
        %v1391 = vadd.f32 %v1386, 1.0
        %v1392 = vadd.f32 %v1388, 1.0
        %v1393 = vrcp.pop %v1389
        %v1394 = vmul.f32 1.0, %v1393
        %v1395 = vrcp.pop %v1390
        %v1396 = vmul.f32 1.0, %v1395
        %v1397 = vrcp.pop %v1391
        %v1398 = vmul.f32 1.0, %v1397
        %v1399 = vrcp.pop %v1392
        %v1400 = vmul.f32 1.0, %v1399
        %v1401 = vld [vmem:[%s6] sm:$0xff]
        %v1402 = vld [vmem:[%s6 + $0x8] sm:$0xff]
        %v1403 = vld [vmem:[%s6 + $0x10] sm:$0xff]
        %v1404 = vld [vmem:[%s6 + $0x18] sm:$0xff]
        %v1405 = vmul.f32 %v1401, %v605
        %v1406 = vmul.f32 %v1402, %v606
        %v1407 = vmul.f32 %v1403, %v607
        %v1408 = vmul.f32 %v1404, %v608
        %v1409 = vxor.u32 %v1405, 2147483648
        %v1410 = vxor.u32 %v1406, 2147483648
        %v1411 = vxor.u32 %v1407, 2147483648
        %v1412 = vxor.u32 %v1408, 2147483648
        %v1413 = vmul.f32 %v1409, 1.442695
        %v1414 = vpow.pop %v1413
        %v1415 = vmul.f32 %v1410, 1.442695
        %v1416 = vpow.pop %v1415
        %v1417 = vmul.f32 %v1411, 1.442695
        %v1418 = vpow.pop %v1417
        %v1419 = vmul.f32 %v1412, 1.442695
        %v1420 = vpow.pop %v1419
        %v1421 = vadd.f32 %v1414, 1.0
        %v1422 = vadd.f32 %v1416, 1.0
        %v1423 = vadd.f32 %v1418, 1.0
        %v1424 = vadd.f32 %v1420, 1.0
        %v1425 = vrcp.pop %v1421
        %v1426 = vmul.f32 1.0, %v1425
        %v1427 = vrcp.pop %v1422
        %v1428 = vmul.f32 1.0, %v1427
        %v1429 = vrcp.pop %v1423
        %v1430 = vmul.f32 1.0, %v1429
        %v1431 = vrcp.pop %v1424
        %v1432 = vmul.f32 1.0, %v1431
        %s1433 = sld [smem:[#allocation4]]
        %s1434 = sld [smem:[#allocation4 + $0x1]]
        %s1435 = sld [smem:[#allocation4 + $0x2]]
        %v1436 = vstv %s1434
        %v1437 = vmul.f32 %v1436, %v1052
        %v1438 = vmul.f32 %v1436, %v1054
        %v1439 = vmul.f32 %v1436, %v1056
        %v1440 = vmul.f32 %v1436, %v1058
        %v1441 = vmul.f32 %v397, 16.0
        %v1442 = vmul.f32 %v398, 16.0
        %v1443 = vmul.f32 %v399, 16.0
        %v1444 = vmul.f32 %v400, 16.0
        %v1446 = vsel %vm591, %v1437, 0
        %v1449 = vsel %vm591, %v1438, 0
        %v1452 = vsel %vm591, %v1439, 0
        %v1455 = vsel %vm591, %v1440, 0
        %1457 = vmatprep.subr.mxu0 %v1442
        %1458 = vmatpush1.msra.mxu0 %v1441
        %1459 = vmatprep.subr.mxu0 %v1444
        %1460 = vmatpush1.msra.mxu0 %v1443
        %1461 = vmatprep.subr.mxu0 0.0
        %1462 = vmatpush1.msra.mxu0 0.0
        %1463 = vmatprep.subr.mxu0 0.0
        %1464 = vmatpush1.msra.mxu0 0.0
        %1465 = vmatprep.subr.mxu0 0.0
        %1466 = vmatpush1.msra.mxu0 0.0
        %1467 = vmatprep.subr.mxu0 0.0
        %1468 = vmatpush1.msra.mxu0 0.0
        %1469 = vmatprep.subr.mxu0 0.0
        %1470 = vmatpush1.msra.mxu0 0.0
        %1471 = vmatprep.subr.mxu0 0.0
        %1472 = vmatpush1.msra.mxu0 0.0
        %1473 = vmatprep.subr.mxu0 0.0
        %1474 = vmatpush1.msra.mxu0 0.0
        %1475 = vmatprep.subr.mxu0 0.0
        %1476 = vmatpush1.msra.mxu0 0.0
        %1477 = vmatprep.subr.mxu0 0.0
        %1478 = vmatpush1.msra.mxu0 0.0
        %1479 = vmatprep.subr.mxu0 0.0
        %1480 = vmatpush1.msra.mxu0 0.0
        %1481 = vmatprep.subr.mxu0 0.0
        %1482 = vmatpush1.msra.mxu0 0.0
        %1483 = vmatprep.subr.mxu0 0.0
        %1484 = vmatpush1.msra.mxu0 0.0
        %1485 = vmatprep.subr.mxu0 0.0
        %1486 = vmatpush1.msra.mxu0 0.0
        %1487 = vmatprep.subr.mxu0 0.0
        %1488 = vmatpush1.msra.mxu0 0.0
        %1489 = vmatprep.subr.mxu0 0.0
        %1490 = vmatpush1.msra.mxu0 0.0
        %1491 = vmatprep.subr.mxu0 0.0
        %1492 = vmatpush1.msra.mxu0 0.0
        %1493 = vmatprep.subr.mxu0 0.0
        %1494 = vmatpush1.msra.mxu0 0.0
        %1495 = vmatprep.subr.mxu0 0.0
        %1496 = vmatpush1.msra.mxu0 0.0
        %1497 = vmatprep.subr.mxu0 0.0
        %1498 = vmatpush1.msra.mxu0 0.0
        %1499 = vmatprep.subr.mxu0 0.0
        %1500 = vmatpush1.msra.mxu0 0.0
        %1501 = vmatprep.subr.mxu0 0.0
        %1502 = vmatpush1.msra.mxu0 0.0
        %1503 = vmatprep.subr.mxu0 0.0
        %1504 = vmatpush1.msra.mxu0 0.0
        %1505 = vmatprep.subr.mxu0 0.0
        %1506 = vmatpush1.msra.mxu0 0.0
        %1507 = vmatprep.subr.mxu0 0.0
        %1508 = vmatpush1.msra.mxu0 0.0
        %1509 = vmatprep.subr.mxu0 0.0
        %1510 = vmatpush1.msra.mxu0 0.0
        %1511 = vmatprep.subr.mxu0 0.0
        %1512 = vmatpush1.msra.mxu0 0.0
        %1513 = vmatprep.subr.mxu0 0.0
        %1514 = vmatpush1.msra.mxu0 0.0
        %1515 = vmatprep.subr.mxu0 0.0
        %1516 = vmatpush1.msra.mxu0 0.0
        %1517 = vmatprep.subr.mxu0 0.0
        %1518 = vmatpush1.msra.mxu0 0.0
        %1519 = vmatprep.subr.mxu0 0.0
        %1520 = vmatpush1.msra.mxu0 0.0
        %1521 = vmatprep.mubr.f32.mxu0 0.0
        %1522 = vmatmul.mubr.f32.gmra.mrb[0].mxu0 %v1446
        %v1523 = vpop.f32.mrb[0].mxu0
        %v1524 = vadd.f32 0.0, %v1523
        %v1525 = vpop.f32.mrb[0].mxu0
        %v1526 = vadd.f32 0.0, %v1525
        %1527 = vmatprep.mubr.f32.mxu0 0.0
        %1528 = vmatmul.mubr.f32.gmra.mrb[0].mxu0 %v1449
        %v1529 = vpop.f32.mrb[0].mxu0
        %v1530 = vadd.f32 0.0, %v1529
        %v1531 = vpop.f32.mrb[0].mxu0
        %v1532 = vadd.f32 0.0, %v1531
        %1533 = vmatprep.mubr.f32.mxu0 0.0
        %1534 = vmatmul.mubr.f32.gmra.mrb[0].mxu0 %v1452
        %v1535 = vpop.f32.mrb[0].mxu0
        %v1536 = vadd.f32 0.0, %v1535
        %v1537 = vpop.f32.mrb[0].mxu0
        %v1538 = vadd.f32 0.0, %v1537
        %1539 = vmatprep.mubr.f32.mxu0 0.0
        %1540 = vmatmul.mubr.f32.gmra.mrb[0].mxu0 %v1455
        %v1541 = vpop.f32.mrb[0].mxu0
        %v1542 = vadd.f32 0.0, %v1541
        %v1543 = vpop.f32.mrb[0].mxu0
        %v1544 = vadd.f32 0.0, %v1543
        %1545 = vdwg.mxu0
        %v1546 = vmul.f32 %v401, 16.0
        %v1547 = vmul.f32 %v402, 16.0
        %v1548 = vmul.f32 %v403, 16.0
        %v1549 = vmul.f32 %v404, 16.0
        %v1551 = vsel %vm591, %v1394, 0
        %v1554 = vsel %vm591, %v1396, 0
        %v1557 = vsel %vm591, %v1398, 0
        %v1560 = vsel %vm591, %v1400, 0
        %1562 = vmatprep.subr.mxu0 %v1547
        %1563 = vmatpush1.msra.mxu0 %v1546
        %1564 = vmatprep.subr.mxu0 %v1549
        %1565 = vmatpush1.msra.mxu0 %v1548
        %1566 = vmatprep.subr.mxu0 0.0
        %1567 = vmatpush1.msra.mxu0 0.0
        %1568 = vmatprep.subr.mxu0 0.0
        %1569 = vmatpush1.msra.mxu0 0.0
        %1570 = vmatprep.subr.mxu0 0.0
        %1571 = vmatpush1.msra.mxu0 0.0
        %1572 = vmatprep.subr.mxu0 0.0
        %1573 = vmatpush1.msra.mxu0 0.0
        %1574 = vmatprep.subr.mxu0 0.0
        %1575 = vmatpush1.msra.mxu0 0.0
        %1576 = vmatprep.subr.mxu0 0.0
        %1577 = vmatpush1.msra.mxu0 0.0
        %1578 = vmatprep.subr.mxu0 0.0
        %1579 = vmatpush1.msra.mxu0 0.0
        %1580 = vmatprep.subr.mxu0 0.0
        %1581 = vmatpush1.msra.mxu0 0.0
        %1582 = vmatprep.subr.mxu0 0.0
        %1583 = vmatpush1.msra.mxu0 0.0
        %1584 = vmatprep.subr.mxu0 0.0
        %1585 = vmatpush1.msra.mxu0 0.0
        %1586 = vmatprep.subr.mxu0 0.0
        %1587 = vmatpush1.msra.mxu0 0.0
        %1588 = vmatprep.subr.mxu0 0.0
        %1589 = vmatpush1.msra.mxu0 0.0
        %1590 = vmatprep.subr.mxu0 0.0
        %1591 = vmatpush1.msra.mxu0 0.0
        %1592 = vmatprep.subr.mxu0 0.0
        %1593 = vmatpush1.msra.mxu0 0.0
        %1594 = vmatprep.subr.mxu0 0.0
        %1595 = vmatpush1.msra.mxu0 0.0
        %1596 = vmatprep.subr.mxu0 0.0
        %1597 = vmatpush1.msra.mxu0 0.0
        %1598 = vmatprep.subr.mxu0 0.0
        %1599 = vmatpush1.msra.mxu0 0.0
        %1600 = vmatprep.subr.mxu0 0.0
        %1601 = vmatpush1.msra.mxu0 0.0
        %1602 = vmatprep.subr.mxu0 0.0
        %1603 = vmatpush1.msra.mxu0 0.0
        %1604 = vmatprep.subr.mxu0 0.0
        %1605 = vmatpush1.msra.mxu0 0.0
        %1606 = vmatprep.subr.mxu0 0.0
        %1607 = vmatpush1.msra.mxu0 0.0
        %1608 = vmatprep.subr.mxu0 0.0
        %1609 = vmatpush1.msra.mxu0 0.0
        %1610 = vmatprep.subr.mxu0 0.0
        %1611 = vmatpush1.msra.mxu0 0.0
        %1612 = vmatprep.subr.mxu0 0.0
        %1613 = vmatpush1.msra.mxu0 0.0
        %1614 = vmatprep.subr.mxu0 0.0
        %1615 = vmatpush1.msra.mxu0 0.0
        %1616 = vmatprep.subr.mxu0 0.0
        %1617 = vmatpush1.msra.mxu0 0.0
        %1618 = vmatprep.subr.mxu0 0.0
        %1619 = vmatpush1.msra.mxu0 0.0
        %1620 = vmatprep.subr.mxu0 0.0
        %1621 = vmatpush1.msra.mxu0 0.0
        %1622 = vmatprep.subr.mxu0 0.0
        %1623 = vmatpush1.msra.mxu0 0.0
        %1624 = vmatprep.subr.mxu0 0.0
        %1625 = vmatpush1.msra.mxu0 0.0
        %1626 = vmatprep.mubr.f32.mxu0 0.0
        %1627 = vmatmul.mubr.f32.gmra.mrb[0].mxu0 %v1551
        %v1628 = vpop.f32.mrb[0].mxu0
        %v1629 = vadd.f32 0.0, %v1628
        %v1630 = vpop.f32.mrb[0].mxu0
        %v1631 = vadd.f32 0.0, %v1630
        %1632 = vmatprep.mubr.f32.mxu0 0.0
        %1633 = vmatmul.mubr.f32.gmra.mrb[0].mxu0 %v1554
        %v1634 = vpop.f32.mrb[0].mxu0
        %v1635 = vadd.f32 0.0, %v1634
        %v1636 = vpop.f32.mrb[0].mxu0
        %v1637 = vadd.f32 0.0, %v1636
        %1638 = vmatprep.mubr.f32.mxu0 0.0
        %1639 = vmatmul.mubr.f32.gmra.mrb[0].mxu0 %v1557
        %v1640 = vpop.f32.mrb[0].mxu0
        %v1641 = vadd.f32 0.0, %v1640
        %v1642 = vpop.f32.mrb[0].mxu0
        %v1643 = vadd.f32 0.0, %v1642
        %1644 = vmatprep.mubr.f32.mxu0 0.0
        %1645 = vmatmul.mubr.f32.gmra.mrb[0].mxu0 %v1560
        %v1646 = vpop.f32.mrb[0].mxu0
        %v1647 = vadd.f32 0.0, %v1646
        %v1648 = vpop.f32.mrb[0].mxu0
        %v1649 = vadd.f32 0.0, %v1648
        %1650 = vdwg.mxu0
        %v1651 = vstv %s1433
        %v1652 = vmul.f32 %v1651, %v1426
        %v1653 = vmul.f32 %v1651, %v1428
        %v1654 = vmul.f32 %v1651, %v1430
        %v1655 = vmul.f32 %v1651, %v1432
        %v1656 = vstv %s1435
        %v1657 = vadd.f32 %v1652, %v1656
        %v1658 = vadd.f32 %v1653, %v1656
        %v1659 = vadd.f32 %v1654, %v1656
        %v1660 = vadd.f32 %v1655, %v1656
        %v1661 = vmul.f32 %v1524, %v1629
        %v1662 = vmul.f32 %v1526, %v1631
        %v1663 = vmul.f32 %v1530, %v1635
        %v1664 = vmul.f32 %v1532, %v1637
        %v1665 = vmul.f32 %v1536, %v1641
        %v1666 = vmul.f32 %v1538, %v1643
        %v1667 = vmul.f32 %v1542, %v1647
        %v1668 = vmul.f32 %v1544, %v1649
        %1670 = vset.pattern.permute.xlu0 0
        %1671 = vperm.xlu0 %1670, %v1657
        %v1672 = vpop.permute.xlu0 %1671
        %1675 = vset.pattern.permute.xlu0 0
        %1676 = vperm.xlu0 %1675, %v1658
        %v1677 = vpop.permute.xlu0 %1676
        %1680 = vset.pattern.permute.xlu0 0
        %1681 = vperm.xlu0 %1680, %v1659
        %v1682 = vpop.permute.xlu0 %1681
        %1685 = vset.pattern.permute.xlu0 0
        %1686 = vperm.xlu0 %1685, %v1660
        %v1687 = vpop.permute.xlu0 %1686
        %v1689 = vadd.f32 %v1661, %v1672
        %v1690 = vadd.f32 %v1662, %v1672
        %v1691 = vadd.f32 %v1663, %v1677
        %v1692 = vadd.f32 %v1664, %v1677
        %v1693 = vadd.f32 %v1665, %v1682
        %v1694 = vadd.f32 %v1666, %v1682
        %v1695 = vadd.f32 %v1667, %v1687
        %v1696 = vadd.f32 %v1668, %v1687
        %v1697 = vmul.f32 %v389, %v1689
        %v1698 = vmul.f32 %v390, %v1690
        %v1699 = vmul.f32 %v391, %v1691
        %v1700 = vmul.f32 %v392, %v1692
        %v1701 = vmul.f32 %v393, %v1693
        %v1702 = vmul.f32 %v394, %v1694
        %v1703 = vmul.f32 %v395, %v1695
        %v1704 = vmul.f32 %v396, %v1696
        %1705 = vst [vmem:[%s383] sm:$0xff] %v1697
        %1706 = vst [vmem:[%s383 + $0x8] sm:$0xff] %v1698
        %1707 = vst [vmem:[%s383 + $0x10] sm:$0xff] %v1699
        %1708 = vst [vmem:[%s383 + $0x18] sm:$0xff] %v1700
        %1709 = vst [vmem:[%s383 + $0x20] sm:$0xff] %v1701
        %1710 = vst [vmem:[%s383 + $0x28] sm:$0xff] %v1702
        %1711 = vst [vmem:[%s383 + $0x30] sm:$0xff] %v1703
        %1712 = vst [vmem:[%s383 + $0x38] sm:$0xff] %v1704
        %s1713 = sand.u32 %s228, 1
        %s1714 = scalar_lea.sflag [#allocation6], %s1713
        %s1715 = sand.u32 %s228, 1
        %s1716 = smul.addr %s1715, 64
        %s1717 = scalar_lea.vmem [#allocation12], %s1716
        // Predicated region
        $region73: #{tpu_custom_call.1} parent=55 // pred_check
          %p1718 = pneg %p238
        $region74: #{tpu_custom_call.1} parent=55 // pred_check_branch
          %1720 = sbr.rel (%p1718) target = $region76
        $region75: #{tpu_custom_call.1} parent=55 // pred_region
          %s1722 = ssub.s32 1024, 1024
          %1723 = vsyncadd %s1714, %s1722
          %s1724 = smul.addr %s26, 8
          %s1725 = smul.addr %s1724, 128
          %s1726 = scalar_lea.hbm %s9, %s1725
          %s1727 = sshll.u32 %s1717, 4
          %s1728 = int_to_ptr.vmem [resolvable:$true] %s1727
          %1733 = dma.vmem_to_hbm [thread:$0]  %s1728, 1024, %s1726, %s1714, 256, 256, 16
        $region76: #{tpu_custom_call.1} parent=55 // pred_fallthru
          _
      $region56: #{tpu_custom_call.1} parent=5 // pred_fallthru
        _
      %p1734 = scmp.le.s32.totalorder 2, %s21
      // Predicated region
      $region77: #{tpu_custom_call.1} parent=5 // pred_check
        %p1735 = pneg %p1734
      $region78: #{tpu_custom_call.1} parent=5 // pred_check_branch
        %1737 = sbr.rel (%p1735) target = $region80
      $region79: #{tpu_custom_call.1} parent=5 // pred_region
        %s1738 = ssub.s32 %s21, 2
        // Predicated region
        $region81: #{tpu_custom_call.1} parent=79 // pred_check
          %p1739 = pneg %p244
        $region82: #{tpu_custom_call.1} parent=79 // pred_check_branch
          %1741 = sbr.rel (%p1739) target = $region84
        $region83: #{tpu_custom_call.1} parent=79 // pred_region
          %s1742 = sand.u32 %s229, 1
          %s1743 = scalar_lea.sflag [#allocation6], %s1742
          %s1744 = sand.u32 %s229, 1
          %s1745 = smul.addr %s1744, 64
          %s1746 = scalar_lea.vmem [#allocation12], %s1745
          %1747 = dma.done %s1743, 1024
        $region84: #{tpu_custom_call.1} parent=79 // pred_fallthru
          _
      $region80: #{tpu_custom_call.1} parent=5 // pred_fallthru
        _
    $region6: #{tpu_custom_call.1} parent=1 // loop_footer
      %s25 = sadd.s32 1, %s21
    $region7: #{tpu_custom_call.1} parent=1 // loop_footer_branch
      %20 = sbr.rel target = $region3
    $region8: #{tpu_custom_call.1} parent=1 // loop_exit
      _
    %1748 = vsyncpa [#allocation5], 1
    %s1749 = scalar_lea.sflag [#allocation5], 1
    %1750 = vsyncpa %s1749, 1
    %1751 = vsyncpa [#allocation10], 1
    %1752 = vsyncpa [#allocation6], 1
    %s1753 = scalar_lea.sflag [#allocation6], 1
    %1754 = vsyncpa %s1753, 1
    %1755 = vsyncpa [#allocation7], 1
    %s1756 = scalar_lea.sflag [#allocation7], 1
    %1757 = vsyncpa %s1756, 1

</llo_original>
